<compile_context>
chip_gen: v5e
topology: v5e:2x2
jax: 0.10.0
libtpu: 0.0.40
codegen_flags: <defaults>
</compile_context>

<pallas_src>
import jax
import jax.numpy as jnp
from jax import lax
from jax.experimental import pallas as pl
from jax.experimental.pallas import tpu as pltpu

# ----------------------------- synthetic config ------------------------------
VOCAB_SIZE = 50
EXTVOCAB_SIZE = 50
PAD = 0
TAG_SIZE = 5

WORD_DIMS = 32                      # config.word_dims == extword_dims
PARSER_WORD_DIMS = 48               # parser_config.word_dims
PARSER_LSTM_HIDDENS = 24            # parser_config.lstm_hiddens -> parser_dim = 48
PARSER_LSTM_LAYERS = 2              # parser_config.lstm_layers
PARSER_MLP_ARC = 32
PARSER_MLP_REL = 16                 # parser_mlp_dim = 48
PARSER_DIM = 2 * PARSER_LSTM_HIDDENS
PARSER_MLP_DIM = PARSER_MLP_ARC + PARSER_MLP_REL

LSTM_HIDDENS = 32                   # config.lstm_hiddens
LSTM_LAYERS = 1                     # config.lstm_layers (fused kernel covers 1 layer)

BATCH = 2
SEQ = 8
NUM_SYN = 3 + PARSER_LSTM_LAYERS    # ScalarMix mixture size

SUBLANE = 8                         # pad the batch (sublane dim) to a multiple of 8


# ----------------------------- the fused kernel --------------------------------
def _fused_bilstm_kernel(xe_ref, xs_ref, wsyn_ref, wxe_ref, wxs_ref, b_ref,
                         sel_ref, m_ref, whh_ref, wproj_ref, o_ref,
                         gx_sc, h_sc, c_sc, pool_sc):
    # xe_ref:   [T*Bp, D]      time-major, batch-padded word embeddings
    # xs_ref:   [T*Bp, Dsyn]   concatenated syntax features
    # wsyn_ref: [Dsyn, D]      ScalarMix-scaled, concatenated transformer_* weights
    # wxe_ref / wxs_ref: [D, 8H]  input->gate weights split over (embed | syn) features,
    #                             gate columns interleaved [i_f,i_b,f_f,f_b,o_f,o_b,g_f,g_b]
    # b_ref:    [1, 8H]        b_ih + b_hh, both directions, same interleave
    # sel_ref:  [Bp, 8H]       1.0 on backward-direction gate columns, 0.0 on forward
    # m_ref:    [T*Bp, 2H]     pre-broadcast masks; [:, :H] = mask[t], [:, H:] = mask[T-1-t]
    # whh_ref:  [2H, 8H]       block-diagonal recurrent weights (same interleave)
    # wproj_ref:[2H, tag]      projection weight, pre-transposed (bias=False)
    # o_ref:    [Bp, tag]
    Bp = o_ref.shape[0]
    TBp, H2 = m_ref.shape               # H2 = 2H (both directions)
    T = TBp // Bp

    # ---- prologue: every timestep's input->gate pre-activation in one MXU pass ----
    x_syn = jnp.dot(xs_ref[...], wsyn_ref[...], preferred_element_type=jnp.float32)
    gx_sc[...] = (jnp.dot(xe_ref[...], wxe_ref[...], preferred_element_type=jnp.float32)
                  + jnp.dot(x_syn, wxs_ref[...], preferred_element_type=jnp.float32)
                  + b_ref[...])

    is_bwd = sel_ref[...] > 0.5          # hoisted: backward-direction column selector

    h_sc[...] = jnp.zeros_like(h_sc)
    c_sc[...] = jnp.zeros_like(c_sc)
    pool_sc[...] = jnp.full_like(pool_sc, -1e30)

    def sigmoid(v):
        # tanh-based logistic: numerically stable (no inf intermediates), stays on the EUP.
        return 0.5 * jnp.tanh(0.5 * v) + 0.5

    def step(t, carry):
        rf = pl.multiple_of(t * Bp, Bp)               # forward direction: row block t
        rb = pl.multiple_of((T - 1 - t) * Bp, Bp)     # backward direction: row block T-1-t
        g_t = gx_sc[pl.ds(rf, Bp), :]                 # [Bp, 8H]
        g_r = gx_sc[pl.ds(rb, Bp), :]                 # [Bp, 8H]
        gx_t = jnp.where(is_bwd, g_r, g_t)
        # One [Bp, 2H] x [2H, 8H] matmul covers both directions' recurrent term.
        gates = gx_t + jnp.dot(h_sc[...], whh_ref[...],
                               preferred_element_type=jnp.float32)   # [Bp, 8H]
        s = sigmoid(gates[:, :3 * H2])                # i|f|o for both directions, [Bp, 6H]
        g_c = jnp.tanh(gates[:, 3 * H2:])             # cell gates, both directions, [Bp, 2H]
        i_g = s[:, :H2]
        f_g = s[:, H2:2 * H2]
        o_g = s[:, 2 * H2:3 * H2]
        m_t = m_ref[pl.ds(rf, Bp), :]                 # [Bp, 2H]
        c_new = f_g * c_sc[...] + i_g * g_c
        h_new = o_g * jnp.tanh(c_new) * m_t           # MyLSTM masking with zero initial state
        c_sc[...] = c_new * m_t
        h_sc[...] = h_new
        # running masked max-pool over time: hiddens + (mask - 1) * 1e6, then max.
        pool_sc[...] = jnp.maximum(pool_sc[...], h_new + (m_t - 1.0) * 1e6)
        return carry

    lax.fori_loop(0, T, step, 0, unroll=True)

    o_ref[...] = jnp.dot(pool_sc[...], wproj_ref[...],
                         preferred_element_type=jnp.float32)


def fused_bilstm_forward(xe, xs, w_syn, w_xe, w_xs, b, sel, m, w_hh, w_proj, *, T, Bp):
    # TODO(synk): for production T, tile the time axis with a grid (carrying h/c/pool in
    # scratch) so gx_sc stays within VMEM (esp. v7x 64 MiB) and the two directions can be
    # split over v7x's two TensorCores.
    TBp, D = xe.shape
    Ds = xs.shape[-1]
    G = w_xe.shape[-1]
    H2 = m.shape[-1]
    tag = w_proj.shape[-1]
    return pl.pallas_call(
        _fused_bilstm_kernel,
        out_shape=jax.ShapeDtypeStruct((Bp, tag), jnp.float32),
        in_specs=[pl.BlockSpec((TBp, D), lambda: (0, 0)),
                  pl.BlockSpec((TBp, Ds), lambda: (0, 0)),
                  pl.BlockSpec((Ds, D), lambda: (0, 0)),
                  pl.BlockSpec((D, G), lambda: (0, 0)),
                  pl.BlockSpec((D, G), lambda: (0, 0)),
                  pl.BlockSpec((1, G), lambda: (0, 0)),
                  pl.BlockSpec((Bp, G), lambda: (0, 0)),
                  pl.BlockSpec((TBp, H2), lambda: (0, 0)),
                  pl.BlockSpec((H2, G), lambda: (0, 0)),
                  pl.BlockSpec((H2, tag), lambda: (0, 0))],
        out_specs=pl.BlockSpec((Bp, tag), lambda: (0, 0)),
        scratch_shapes=[pltpu.VMEM((TBp, G), jnp.float32),   # all gate pre-activations
                        pltpu.VMEM((Bp, H2), jnp.float32),   # h (fwd | bwd)
                        pltpu.VMEM((Bp, H2), jnp.float32),   # c (fwd | bwd)
                        pltpu.VMEM((Bp, H2), jnp.float32)],  # running max-pool
    )(xe, xs, w_syn, w_xe, w_xs, b, sel, m, w_hh, w_proj)


# ----------------------------- weight plumbing --------------------------------
_GATE_PERM = (0, 1, 3, 2)   # PyTorch gate order (i, f, g, o) -> kernel order (i, f, o, g)


def _interleave_gate_cols(mat_f, mat_b, H):
    """mat_f/mat_b: [..., 4H] with PyTorch gate order (i, f, g, o) on the last axis.
    Returns [..., 8H] with column blocks [i_f, i_b, f_f, f_b, o_f, o_b, g_f, g_b]."""
    blocks = []
    for g in _GATE_PERM:
        blocks.append(mat_f[..., g * H:(g + 1) * H])
        blocks.append(mat_b[..., g * H:(g + 1) * H])
    return jnp.concatenate(blocks, axis=-1).astype(jnp.float32)


# ----------------------------- model forward ---------------------------------
def bilstm_model_forward(params, words, extwords, synxs, masks):
    B, T = words.shape
    D = WORD_DIMS
    H = LSTM_HIDDENS
    Bp = ((B + SUBLANE - 1) // SUBLANE) * SUBLANE

    # Embedding lookups (gather glue; word_embed is zero-initialized exactly as __init__).
    x_word = jnp.take(params["word_embed"], words, axis=0)            # [B, T, D]
    x_ext = jnp.take(params["extword_embed"], extwords, axis=0)
    x_embed = (x_word + x_ext).astype(jnp.float32)

    # ScalarMix folded into the 5 syntax projections (weights pre-scaled & concatenated).
    coef = jax.nn.softmax(params["mix_scalars"].astype(jnp.float32)) * params["mix_gamma"]
    w_blocks = ([params["transformer_emb"]] + list(params["transformer_lstm"])
                + [params["transformer_dep"], params["transformer_head"]])
    w_syn = jnp.concatenate([coef[k] * w_blocks[k].T.astype(jnp.float32)
                             for k in range(len(w_blocks))], axis=0)  # [Dsyn, D]
    x_syn_cat = jnp.concatenate([s.astype(jnp.float32) for s in synxs], axis=-1)

    # Time-major, pad batch to 8 sublanes, flatten to rows (padded rows are fully masked).
    def to_rows(a):
        a = jnp.transpose(a, (1, 0, 2))                               # [T, B, F]
        a = jnp.pad(a, ((0, 0), (0, Bp - B), (0, 0)))
        return a.reshape(T * Bp, a.shape[-1])

    xe_rows = to_rows(x_embed)                                        # [T*Bp, D]
    xs_rows = to_rows(x_syn_cat)                                      # [T*Bp, Dsyn]

    m_tm = jnp.pad(jnp.transpose(masks.astype(jnp.float32), (1, 0)),
                   ((0, 0), (0, Bp - B)))                             # [T, Bp]
    # Pre-broadcast combined mask: fwd half sees mask[t], bwd half sees mask[T-1-t].
    m_comb = jnp.concatenate(
        [jnp.broadcast_to(m_tm[:, :, None], (T, Bp, H)),
         jnp.broadcast_to(m_tm[::-1, :, None], (T, Bp, H))],
        axis=-1).reshape(T * Bp, 2 * H)

    # eval mode: drop_bi_input_independent / LSTM variational dropout are no-ops.
    assert LSTM_LAYERS == 1  # TODO(synk): multi-layer LSTM stacking not implemented in the fused kernel.
    lp = params["lstm"][0]
    w_ih_f, w_hh_f, b_ih_f, b_hh_f = lp["fwd"]
    w_ih_b, w_hh_b, b_ih_b, b_hh_b = lp["bwd"]
    w_x = _interleave_gate_cols(w_ih_f.T, w_ih_b.T, H)                # [2D, 8H]
    w_x_emb = w_x[:D]                                                 # rows for x_embed
    w_x_syn = w_x[D:]                                                 # rows for x_syn
    b_x = _interleave_gate_cols((b_ih_f + b_hh_f)[None, :],
                                (b_ih_b + b_hh_b)[None, :], H)        # [1, 8H]

    # Backward-direction gate-column selector (interleaved layout: odd H-blocks are bwd).
    gate_is_bwd = ((jnp.arange(8 * H) // H) % 2).astype(jnp.float32)  # [8H]
    sel_bwd = jnp.broadcast_to(gate_is_bwd[None, :], (Bp, 8 * H))

    # Block-diagonal recurrent weights and pre-transposed projection weight.
    zeros_h = jnp.zeros((H, 4 * H), jnp.float32)
    whh_f_pad = jnp.concatenate([w_hh_f.T.astype(jnp.float32), zeros_h], axis=0)
    whh_b_pad = jnp.concatenate([zeros_h, w_hh_b.T.astype(jnp.float32)], axis=0)
    w_hh = _interleave_gate_cols(whh_f_pad, whh_b_pad, H)             # [2H, 8H]
    w_proj = params["proj"].T.astype(jnp.float32)                     # [2H, tag]

    out = fused_bilstm_forward(xe_rows, xs_rows, w_syn, w_x_emb, w_x_syn, b_x,
                               sel_bwd, m_comb, w_hh, w_proj, T=T, Bp=Bp)   # [Bp, tag]
    return out[:B]


# ----------------------------- deterministic params --------------------------
def init_params(key):
    ks = iter(jax.random.split(key, 32))

    def nrm(shape, scale=0.1):
        return (scale * jax.random.normal(next(ks), shape)).astype(jnp.float32)

    extword = nrm((EXTVOCAB_SIZE, WORD_DIMS))
    extword = extword.at[PAD].set(0.0)  # padding_idx

    params = {
        "word_embed": jnp.zeros((VOCAB_SIZE, WORD_DIMS), jnp.float32),  # word_init zeros
        "extword_embed": extword,                                       # pretrained (frozen)
        "transformer_emb": nrm((WORD_DIMS, PARSER_WORD_DIMS)),
        "transformer_lstm": [nrm((WORD_DIMS, PARSER_DIM)) for _ in range(PARSER_LSTM_LAYERS)],
        "transformer_dep": nrm((WORD_DIMS, PARSER_MLP_DIM)),
        "transformer_head": nrm((WORD_DIMS, PARSER_MLP_DIM)),
        "mix_scalars": nrm((NUM_SYN,), scale=0.5),
        "mix_gamma": jnp.float32(1.0),
        "proj": nrm((TAG_SIZE, 2 * LSTM_HIDDENS)),
        "lstm": [],
    }
    H = LSTM_HIDDENS
    for layer in range(LSTM_LAYERS):
        in_sz = 2 * WORD_DIMS if layer == 0 else 2 * H
        layer_p = {}
        for direction in ("fwd", "bwd"):
            layer_p[direction] = (nrm((4 * H, in_sz)),   # w_ih  (gate order i, f, g, o)
                                  nrm((4 * H, H)),       # w_hh
                                  nrm((4 * H,)),         # b_ih
                                  nrm((4 * H,)))         # b_hh
        params["lstm"].append(layer_p)
    return params


# ----------------------------- main -------------------------------------------
if __name__ == "__main__":
    key = jax.random.PRNGKey(0)
    k_par, k_w, k_e, k_s = jax.random.split(key, 4)

    params = init_params(k_par)

    words = jax.random.randint(k_w, (BATCH, SEQ), 1, VOCAB_SIZE, dtype=jnp.int32)
    extwords = jax.random.randint(k_e, (BATCH, SEQ), 1, EXTVOCAB_SIZE, dtype=jnp.int32)

    syn_dims = ([PARSER_WORD_DIMS] + [PARSER_DIM] * PARSER_LSTM_LAYERS
                + [PARSER_MLP_DIM, PARSER_MLP_DIM])
    syn_keys = jax.random.split(k_s, len(syn_dims))
    synxs = [0.1 * jax.random.normal(sk, (BATCH, SEQ, d)).astype(jnp.float32)
             for sk, d in zip(syn_keys, syn_dims)]

    # lengths [8, 5]
    lengths = jnp.array([SEQ, 5], dtype=jnp.int32)
    masks = (jnp.arange(SEQ)[None, :] < lengths[:, None]).astype(jnp.float32)
    # zero out padded ids / features like padded batches do
    words = (words * masks.astype(jnp.int32))
    extwords = (extwords * masks.astype(jnp.int32))

    fwd = jax.jit(bilstm_model_forward)
    out = fwd(params, words, extwords, synxs, masks)
    out = jax.block_until_ready(out)

    assert out.shape == (BATCH, TAG_SIZE), out.shape
    assert bool(jnp.all(jnp.isfinite(out)))
    print("KERNEL_OK")
</pallas_src>

<mosaic_0001>
module attributes {stable_mosaic.version = 11 : i64} {
  func.func @_fused_bilstm_kernel(%arg0: memref<64x32xf32, #tpu.memory_space<vmem>>, %arg1: memref<64x240xf32, #tpu.memory_space<vmem>>, %arg2: memref<240x32xf32, #tpu.memory_space<vmem>>, %arg3: memref<32x256xf32, #tpu.memory_space<vmem>>, %arg4: memref<32x256xf32, #tpu.memory_space<vmem>>, %arg5: memref<1x256xf32, #tpu.memory_space<vmem>>, %arg6: memref<8x256xf32, #tpu.memory_space<vmem>>, %arg7: memref<64x64xf32, #tpu.memory_space<vmem>>, %arg8: memref<64x256xf32, #tpu.memory_space<vmem>>, %arg9: memref<64x5xf32, #tpu.memory_space<vmem>>, %arg10: memref<8x5xf32, #tpu.memory_space<vmem>>, %arg11: memref<64x256xf32, #tpu.memory_space<vmem>>, %arg12: memref<8x64xf32, #tpu.memory_space<vmem>>, %arg13: memref<8x64xf32, #tpu.memory_space<vmem>>, %arg14: memref<8x64xf32, #tpu.memory_space<vmem>>) attributes {dimension_semantics = [], scalar_prefetch = 0 : i64, scratch_operands = 4 : i64, tpu.core_type = #tpu.core_type<tc>} {
    %c0 = arith.constant 0 : index
    %c0_0 = arith.constant 0 : index
    %0 = vector.load %arg1[%c0, %c0_0] : memref<64x240xf32, #tpu.memory_space<vmem>>, vector<64x240xf32>
    %c0_1 = arith.constant 0 : index
    %c0_2 = arith.constant 0 : index
    %1 = vector.load %arg2[%c0_1, %c0_2] : memref<240x32xf32, #tpu.memory_space<vmem>>, vector<240x32xf32>
    %cst = arith.constant dense<0.000000e+00> : vector<64x32xf32>
    %2 = tpu.matmul %0, %1, %cst {dimension_numbers = #tpu.dot_dimension_numbers<[1], [0], [0], [1], [0, 0, 1, 1], [], []>} : vector<64x240xf32>, vector<240x32xf32>, vector<64x32xf32> -> vector<64x32xf32>
    %c0_3 = arith.constant 0 : index
    %c0_4 = arith.constant 0 : index
    %3 = vector.load %arg0[%c0_3, %c0_4] : memref<64x32xf32, #tpu.memory_space<vmem>>, vector<64x32xf32>
    %c0_5 = arith.constant 0 : index
    %c0_6 = arith.constant 0 : index
    %4 = vector.load %arg3[%c0_5, %c0_6] : memref<32x256xf32, #tpu.memory_space<vmem>>, vector<32x256xf32>
    %cst_7 = arith.constant dense<0.000000e+00> : vector<64x256xf32>
    %5 = tpu.matmul %3, %4, %cst_7 {dimension_numbers = #tpu.dot_dimension_numbers<[1], [0], [0], [1], [0, 0, 1, 1], [], []>} : vector<64x32xf32>, vector<32x256xf32>, vector<64x256xf32> -> vector<64x256xf32>
    %c0_8 = arith.constant 0 : index
    %c0_9 = arith.constant 0 : index
    %6 = vector.load %arg4[%c0_8, %c0_9] : memref<32x256xf32, #tpu.memory_space<vmem>>, vector<32x256xf32>
    %cst_10 = arith.constant dense<0.000000e+00> : vector<64x256xf32>
    %7 = tpu.matmul %2, %6, %cst_10 {dimension_numbers = #tpu.dot_dimension_numbers<[1], [0], [0], [1], [0, 0, 1, 1], [], []>} : vector<64x32xf32>, vector<32x256xf32>, vector<64x256xf32> -> vector<64x256xf32>
    %8 = arith.addf %5, %7 : vector<64x256xf32>
    %c0_11 = arith.constant 0 : index
    %c0_12 = arith.constant 0 : index
    %9 = vector.load %arg5[%c0_11, %c0_12] : memref<1x256xf32, #tpu.memory_space<vmem>>, vector<1x256xf32>
    %10 = vector.broadcast %9 : vector<1x256xf32> to vector<64x256xf32>
    %11 = arith.addf %8, %10 : vector<64x256xf32>
    %c0_13 = arith.constant 0 : index
    %c0_14 = arith.constant 0 : index
    %12 = vector.load %arg11[%c0_13, %c0_14] : memref<64x256xf32, #tpu.memory_space<vmem>>, vector<64x256xf32>
    tpu.vector_store %arg11[%c0_13, %c0_14], %11 {strides = array<i32>} : memref<64x256xf32, #tpu.memory_space<vmem>>, vector<64x256xf32>,
    %c0_15 = arith.constant 0 : index
    %c0_16 = arith.constant 0 : index
    %13 = vector.load %arg6[%c0_15, %c0_16] : memref<8x256xf32, #tpu.memory_space<vmem>>, vector<8x256xf32>
    %cst_17 = arith.constant 5.000000e-01 : f32
    %14 = vector.broadcast %cst_17 : f32 to vector<8x256xf32>
    %15 = arith.cmpf ogt, %13, %14 : vector<8x256xf32>
    %cst_18 = arith.constant 0.000000e+00 : f32
    %16 = vector.broadcast %cst_18 : f32 to vector<8x64xf32>
    %c0_19 = arith.constant 0 : index
    %c0_20 = arith.constant 0 : index
    %17 = vector.load %arg12[%c0_19, %c0_20] : memref<8x64xf32, #tpu.memory_space<vmem>>, vector<8x64xf32>
    tpu.vector_store %arg12[%c0_19, %c0_20], %16 {strides = array<i32>} : memref<8x64xf32, #tpu.memory_space<vmem>>, vector<8x64xf32>,
    %cst_21 = arith.constant 0.000000e+00 : f32
    %18 = vector.broadcast %cst_21 : f32 to vector<8x64xf32>
    %c0_22 = arith.constant 0 : index
    %c0_23 = arith.constant 0 : index
    %19 = vector.load %arg13[%c0_22, %c0_23] : memref<8x64xf32, #tpu.memory_space<vmem>>, vector<8x64xf32>
    tpu.vector_store %arg13[%c0_22, %c0_23], %18 {strides = array<i32>} : memref<8x64xf32, #tpu.memory_space<vmem>>, vector<8x64xf32>,
    %cst_24 = arith.constant -1.000000e+30 : f32
    %20 = vector.broadcast %cst_24 : f32 to vector<8x64xf32>
    %c0_25 = arith.constant 0 : index
    %c0_26 = arith.constant 0 : index
    %21 = vector.load %arg14[%c0_25, %c0_26] : memref<8x64xf32, #tpu.memory_space<vmem>>, vector<8x64xf32>
    tpu.vector_store %arg14[%c0_25, %c0_26], %20 {strides = array<i32>} : memref<8x64xf32, #tpu.memory_space<vmem>>, vector<8x64xf32>,
    %c0_i32 = arith.constant 0 : i32
    %c8_i32 = arith.constant 8 : i32
    %22 = arith.muli %c0_i32, %c8_i32 : i32
    %23 = tpu.assume_multiple %22, 8 : i32
    %c7_i32 = arith.constant 7 : i32
    %24 = arith.subi %c7_i32, %c0_i32 : i32
    %c8_i32_27 = arith.constant 8 : i32
    %25 = arith.muli %24, %c8_i32_27 : i32
    %26 = tpu.assume_multiple %25, 8 : i32
    %27 = arith.index_cast %23 : i32 to index
    %c0_28 = arith.constant 0 : index
    %28 = vector.load %arg11[%27, %c0_28] : memref<64x256xf32, #tpu.memory_space<vmem>>, vector<8x256xf32>
    %29 = arith.index_cast %26 : i32 to index
    %c0_29 = arith.constant 0 : index
    %30 = vector.load %arg11[%29, %c0_29] : memref<64x256xf32, #tpu.memory_space<vmem>>, vector<8x256xf32>
    %31 = arith.select %15, %30, %28 : vector<8x256xi1>, vector<8x256xf32>
    %c0_30 = arith.constant 0 : index
    %c0_31 = arith.constant 0 : index
    %32 = vector.load %arg12[%c0_30, %c0_31] : memref<8x64xf32, #tpu.memory_space<vmem>>, vector<8x64xf32>
    %c0_32 = arith.constant 0 : index
    %c0_33 = arith.constant 0 : index
    %33 = vector.load %arg8[%c0_32, %c0_33] : memref<64x256xf32, #tpu.memory_space<vmem>>, vector<64x256xf32>
    %cst_34 = arith.constant dense<0.000000e+00> : vector<8x256xf32>
    %34 = tpu.matmul %32, %33, %cst_34 {dimension_numbers = #tpu.dot_dimension_numbers<[1], [0], [0], [1], [0, 0, 1, 1], [], []>} : vector<8x64xf32>, vector<64x256xf32>, vector<8x256xf32> -> vector<8x256xf32>
    %35 = arith.addf %31, %34 : vector<8x256xf32>
    %36 = vector.extract_strided_slice %35 {offsets = [0, 0], sizes = [8, 192], strides = [1, 1]} : vector<8x256xf32> to vector<8x192xf32>
    %cst_35 = arith.constant 5.000000e-01 : f32
    %37 = vector.broadcast %cst_35 : f32 to vector<8x192xf32>
    %38 = arith.mulf %37, %36 : vector<8x192xf32>
    %39 = math.tanh %38 : vector<8x192xf32>
    %cst_36 = arith.constant 5.000000e-01 : f32
    %40 = vector.broadcast %cst_36 : f32 to vector<8x192xf32>
    %41 = arith.mulf %40, %39 : vector<8x192xf32>
    %cst_37 = arith.constant 5.000000e-01 : f32
    %42 = vector.broadcast %cst_37 : f32 to vector<8x192xf32>
    %43 = arith.addf %41, %42 : vector<8x192xf32>
    %44 = vector.extract_strided_slice %35 {offsets = [0, 192], sizes = [8, 64], strides = [1, 1]} : vector<8x256xf32> to vector<8x64xf32>
    %45 = math.tanh %44 : vector<8x64xf32>
    %46 = vector.extract_strided_slice %43 {offsets = [0, 0], sizes = [8, 64], strides = [1, 1]} : vector<8x192xf32> to vector<8x64xf32>
    %47 = vector.extract_strided_slice %43 {offsets = [0, 64], sizes = [8, 64], strides = [1, 1]} : vector<8x192xf32> to vector<8x64xf32>
    %48 = vector.extract_strided_slice %43 {offsets = [0, 128], sizes = [8, 64], strides = [1, 1]} : vector<8x192xf32> to vector<8x64xf32>
    %49 = arith.index_cast %23 : i32 to index
    %c0_38 = arith.constant 0 : index
    %50 = vector.load %arg7[%49, %c0_38] : memref<64x64xf32, #tpu.memory_space<vmem>>, vector<8x64xf32>
    %c0_39 = arith.constant 0 : index
    %c0_40 = arith.constant 0 : index
    %51 = vector.load %arg13[%c0_39, %c0_40] : memref<8x64xf32, #tpu.memory_space<vmem>>, vector<8x64xf32>
    %52 = arith.mulf %47, %51 : vector<8x64xf32>
    %53 = arith.mulf %46, %45 : vector<8x64xf32>
    %54 = arith.addf %52, %53 : vector<8x64xf32>
    %55 = math.tanh %54 : vector<8x64xf32>
    %56 = arith.mulf %48, %55 : vector<8x64xf32>
    %57 = arith.mulf %56, %50 : vector<8x64xf32>
    %58 = arith.mulf %54, %50 : vector<8x64xf32>
    %c0_41 = arith.constant 0 : index
    %c0_42 = arith.constant 0 : index
    %59 = vector.load %arg13[%c0_41, %c0_42] : memref<8x64xf32, #tpu.memory_space<vmem>>, vector<8x64xf32>
    tpu.vector_store %arg13[%c0_41, %c0_42], %58 {strides = array<i32>} : memref<8x64xf32, #tpu.memory_space<vmem>>, vector<8x64xf32>,
    %c0_43 = arith.constant 0 : index
    %c0_44 = arith.constant 0 : index
    %60 = vector.load %arg12[%c0_43, %c0_44] : memref<8x64xf32, #tpu.memory_space<vmem>>, vector<8x64xf32>
    tpu.vector_store %arg12[%c0_43, %c0_44], %57 {strides = array<i32>} : memref<8x64xf32, #tpu.memory_space<vmem>>, vector<8x64xf32>,
    %c0_45 = arith.constant 0 : index
    %c0_46 = arith.constant 0 : index
    %61 = vector.load %arg14[%c0_45, %c0_46] : memref<8x64xf32, #tpu.memory_space<vmem>>, vector<8x64xf32>
    %cst_47 = arith.constant 1.000000e+00 : f32
    %62 = vector.broadcast %cst_47 : f32 to vector<8x64xf32>
    %63 = arith.subf %50, %62 : vector<8x64xf32>
    %cst_48 = arith.constant 1.000000e+06 : f32
    %64 = vector.broadcast %cst_48 : f32 to vector<8x64xf32>
    %65 = arith.mulf %63, %64 : vector<8x64xf32>
    %66 = arith.addf %57, %65 : vector<8x64xf32>
    %67 = arith.maximumf %61, %66 : vector<8x64xf32>
    %c0_49 = arith.constant 0 : index
    %c0_50 = arith.constant 0 : index
    %68 = vector.load %arg14[%c0_49, %c0_50] : memref<8x64xf32, #tpu.memory_space<vmem>>, vector<8x64xf32>
    tpu.vector_store %arg14[%c0_49, %c0_50], %67 {strides = array<i32>} : memref<8x64xf32, #tpu.memory_space<vmem>>, vector<8x64xf32>,
    %c1_i32 = arith.constant 1 : i32
    %c8_i32_51 = arith.constant 8 : i32
    %69 = arith.muli %c1_i32, %c8_i32_51 : i32
    %70 = tpu.assume_multiple %69, 8 : i32
    %c7_i32_52 = arith.constant 7 : i32
    %71 = arith.subi %c7_i32_52, %c1_i32 : i32
    %c8_i32_53 = arith.constant 8 : i32
    %72 = arith.muli %71, %c8_i32_53 : i32
    %73 = tpu.assume_multiple %72, 8 : i32
    %74 = arith.index_cast %70 : i32 to index
    %c0_54 = arith.constant 0 : index
    %75 = vector.load %arg11[%74, %c0_54] : memref<64x256xf32, #tpu.memory_space<vmem>>, vector<8x256xf32>
    %76 = arith.index_cast %73 : i32 to index
    %c0_55 = arith.constant 0 : index
    %77 = vector.load %arg11[%76, %c0_55] : memref<64x256xf32, #tpu.memory_space<vmem>>, vector<8x256xf32>
    %78 = arith.select %15, %77, %75 : vector<8x256xi1>, vector<8x256xf32>
    %c0_56 = arith.constant 0 : index
    %c0_57 = arith.constant 0 : index
    %79 = vector.load %arg12[%c0_56, %c0_57] : memref<8x64xf32, #tpu.memory_space<vmem>>, vector<8x64xf32>
    %c0_58 = arith.constant 0 : index
    %c0_59 = arith.constant 0 : index
    %80 = vector.load %arg8[%c0_58, %c0_59] : memref<64x256xf32, #tpu.memory_space<vmem>>, vector<64x256xf32>
    %cst_60 = arith.constant dense<0.000000e+00> : vector<8x256xf32>
    %81 = tpu.matmul %79, %80, %cst_60 {dimension_numbers = #tpu.dot_dimension_numbers<[1], [0], [0], [1], [0, 0, 1, 1], [], []>} : vector<8x64xf32>, vector<64x256xf32>, vector<8x256xf32> -> vector<8x256xf32>
    %82 = arith.addf %78, %81 : vector<8x256xf32>
    %83 = vector.extract_strided_slice %82 {offsets = [0, 0], sizes = [8, 192], strides = [1, 1]} : vector<8x256xf32> to vector<8x192xf32>
    %cst_61 = arith.constant 5.000000e-01 : f32
    %84 = vector.broadcast %cst_61 : f32 to vector<8x192xf32>
    %85 = arith.mulf %84, %83 : vector<8x192xf32>
    %86 = math.tanh %85 : vector<8x192xf32>
    %cst_62 = arith.constant 5.000000e-01 : f32
    %87 = vector.broadcast %cst_62 : f32 to vector<8x192xf32>
    %88 = arith.mulf %87, %86 : vector<8x192xf32>
    %cst_63 = arith.constant 5.000000e-01 : f32
    %89 = vector.broadcast %cst_63 : f32 to vector<8x192xf32>
    %90 = arith.addf %88, %89 : vector<8x192xf32>
    %91 = vector.extract_strided_slice %82 {offsets = [0, 192], sizes = [8, 64], strides = [1, 1]} : vector<8x256xf32> to vector<8x64xf32>
    %92 = math.tanh %91 : vector<8x64xf32>
    %93 = vector.extract_strided_slice %90 {offsets = [0, 0], sizes = [8, 64], strides = [1, 1]} : vector<8x192xf32> to vector<8x64xf32>
    %94 = vector.extract_strided_slice %90 {offsets = [0, 64], sizes = [8, 64], strides = [1, 1]} : vector<8x192xf32> to vector<8x64xf32>
    %95 = vector.extract_strided_slice %90 {offsets = [0, 128], sizes = [8, 64], strides = [1, 1]} : vector<8x192xf32> to vector<8x64xf32>
    %96 = arith.index_cast %70 : i32 to index
    %c0_64 = arith.constant 0 : index
    %97 = vector.load %arg7[%96, %c0_64] : memref<64x64xf32, #tpu.memory_space<vmem>>, vector<8x64xf32>
    %c0_65 = arith.constant 0 : index
    %c0_66 = arith.constant 0 : index
    %98 = vector.load %arg13[%c0_65, %c0_66] : memref<8x64xf32, #tpu.memory_space<vmem>>, vector<8x64xf32>
    %99 = arith.mulf %94, %98 : vector<8x64xf32>
    %100 = arith.mulf %93, %92 : vector<8x64xf32>
    %101 = arith.addf %99, %100 : vector<8x64xf32>
    %102 = math.tanh %101 : vector<8x64xf32>
    %103 = arith.mulf %95, %102 : vector<8x64xf32>
    %104 = arith.mulf %103, %97 : vector<8x64xf32>
    %105 = arith.mulf %101, %97 : vector<8x64xf32>
    %c0_67 = arith.constant 0 : index
    %c0_68 = arith.constant 0 : index
    %106 = vector.load %arg13[%c0_67, %c0_68] : memref<8x64xf32, #tpu.memory_space<vmem>>, vector<8x64xf32>
    tpu.vector_store %arg13[%c0_67, %c0_68], %105 {strides = array<i32>} : memref<8x64xf32, #tpu.memory_space<vmem>>, vector<8x64xf32>,
    %c0_69 = arith.constant 0 : index
    %c0_70 = arith.constant 0 : index
    %107 = vector.load %arg12[%c0_69, %c0_70] : memref<8x64xf32, #tpu.memory_space<vmem>>, vector<8x64xf32>
    tpu.vector_store %arg12[%c0_69, %c0_70], %104 {strides = array<i32>} : memref<8x64xf32, #tpu.memory_space<vmem>>, vector<8x64xf32>,
    %c0_71 = arith.constant 0 : index
    %c0_72 = arith.constant 0 : index
    %108 = vector.load %arg14[%c0_71, %c0_72] : memref<8x64xf32, #tpu.memory_space<vmem>>, vector<8x64xf32>
    %cst_73 = arith.constant 1.000000e+00 : f32
    %109 = vector.broadcast %cst_73 : f32 to vector<8x64xf32>
    %110 = arith.subf %97, %109 : vector<8x64xf32>
    %cst_74 = arith.constant 1.000000e+06 : f32
    %111 = vector.broadcast %cst_74 : f32 to vector<8x64xf32>
    %112 = arith.mulf %110, %111 : vector<8x64xf32>
    %113 = arith.addf %104, %112 : vector<8x64xf32>
    %114 = arith.maximumf %108, %113 : vector<8x64xf32>
    %c0_75 = arith.constant 0 : index
    %c0_76 = arith.constant 0 : index
    %115 = vector.load %arg14[%c0_75, %c0_76] : memref<8x64xf32, #tpu.memory_space<vmem>>, vector<8x64xf32>
    tpu.vector_store %arg14[%c0_75, %c0_76], %114 {strides = array<i32>} : memref<8x64xf32, #tpu.memory_space<vmem>>, vector<8x64xf32>,
    %c2_i32 = arith.constant 2 : i32
    %c8_i32_77 = arith.constant 8 : i32
    %116 = arith.muli %c2_i32, %c8_i32_77 : i32
    %117 = tpu.assume_multiple %116, 8 : i32
    %c7_i32_78 = arith.constant 7 : i32
    %118 = arith.subi %c7_i32_78, %c2_i32 : i32
    %c8_i32_79 = arith.constant 8 : i32
    %119 = arith.muli %118, %c8_i32_79 : i32
    %120 = tpu.assume_multiple %119, 8 : i32
    %121 = arith.index_cast %117 : i32 to index
    %c0_80 = arith.constant 0 : index
    %122 = vector.load %arg11[%121, %c0_80] : memref<64x256xf32, #tpu.memory_space<vmem>>, vector<8x256xf32>
    %123 = arith.index_cast %120 : i32 to index
    %c0_81 = arith.constant 0 : index
    %124 = vector.load %arg11[%123, %c0_81] : memref<64x256xf32, #tpu.memory_space<vmem>>, vector<8x256xf32>
    %125 = arith.select %15, %124, %122 : vector<8x256xi1>, vector<8x256xf32>
    %c0_82 = arith.constant 0 : index
    %c0_83 = arith.constant 0 : index
    %126 = vector.load %arg12[%c0_82, %c0_83] : memref<8x64xf32, #tpu.memory_space<vmem>>, vector<8x64xf32>
    %c0_84 = arith.constant 0 : index
    %c0_85 = arith.constant 0 : index
    %127 = vector.load %arg8[%c0_84, %c0_85] : memref<64x256xf32, #tpu.memory_space<vmem>>, vector<64x256xf32>
    %cst_86 = arith.constant dense<0.000000e+00> : vector<8x256xf32>
    %128 = tpu.matmul %126, %127, %cst_86 {dimension_numbers = #tpu.dot_dimension_numbers<[1], [0], [0], [1], [0, 0, 1, 1], [], []>} : vector<8x64xf32>, vector<64x256xf32>, vector<8x256xf32> -> vector<8x256xf32>
    %129 = arith.addf %125, %128 : vector<8x256xf32>
    %130 = vector.extract_strided_slice %129 {offsets = [0, 0], sizes = [8, 192], strides = [1, 1]} : vector<8x256xf32> to vector<8x192xf32>
    %cst_87 = arith.constant 5.000000e-01 : f32
    %131 = vector.broadcast %cst_87 : f32 to vector<8x192xf32>
    %132 = arith.mulf %131, %130 : vector<8x192xf32>
    %133 = math.tanh %132 : vector<8x192xf32>
    %cst_88 = arith.constant 5.000000e-01 : f32
    %134 = vector.broadcast %cst_88 : f32 to vector<8x192xf32>
    %135 = arith.mulf %134, %133 : vector<8x192xf32>
    %cst_89 = arith.constant 5.000000e-01 : f32
    %136 = vector.broadcast %cst_89 : f32 to vector<8x192xf32>
    %137 = arith.addf %135, %136 : vector<8x192xf32>
    %138 = vector.extract_strided_slice %129 {offsets = [0, 192], sizes = [8, 64], strides = [1, 1]} : vector<8x256xf32> to vector<8x64xf32>
    %139 = math.tanh %138 : vector<8x64xf32>
    %140 = vector.extract_strided_slice %137 {offsets = [0, 0], sizes = [8, 64], strides = [1, 1]} : vector<8x192xf32> to vector<8x64xf32>
    %141 = vector.extract_strided_slice %137 {offsets = [0, 64], sizes = [8, 64], strides = [1, 1]} : vector<8x192xf32> to vector<8x64xf32>
    %142 = vector.extract_strided_slice %137 {offsets = [0, 128], sizes = [8, 64], strides = [1, 1]} : vector<8x192xf32> to vector<8x64xf32>
    %143 = arith.index_cast %117 : i32 to index
    %c0_90 = arith.constant 0 : index
    %144 = vector.load %arg7[%143, %c0_90] : memref<64x64xf32, #tpu.memory_space<vmem>>, vector<8x64xf32>
    %c0_91 = arith.constant 0 : index
    %c0_92 = arith.constant 0 : index
    %145 = vector.load %arg13[%c0_91, %c0_92] : memref<8x64xf32, #tpu.memory_space<vmem>>, vector<8x64xf32>
    %146 = arith.mulf %141, %145 : vector<8x64xf32>
    %147 = arith.mulf %140, %139 : vector<8x64xf32>
    %148 = arith.addf %146, %147 : vector<8x64xf32>
    %149 = math.tanh %148 : vector<8x64xf32>
    %150 = arith.mulf %142, %149 : vector<8x64xf32>
    %151 = arith.mulf %150, %144 : vector<8x64xf32>
    %152 = arith.mulf %148, %144 : vector<8x64xf32>
    %c0_93 = arith.constant 0 : index
    %c0_94 = arith.constant 0 : index
    %153 = vector.load %arg13[%c0_93, %c0_94] : memref<8x64xf32, #tpu.memory_space<vmem>>, vector<8x64xf32>
    tpu.vector_store %arg13[%c0_93, %c0_94], %152 {strides = array<i32>} : memref<8x64xf32, #tpu.memory_space<vmem>>, vector<8x64xf32>,
    %c0_95 = arith.constant 0 : index
    %c0_96 = arith.constant 0 : index
    %154 = vector.load %arg12[%c0_95, %c0_96] : memref<8x64xf32, #tpu.memory_space<vmem>>, vector<8x64xf32>
    tpu.vector_store %arg12[%c0_95, %c0_96], %151 {strides = array<i32>} : memref<8x64xf32, #tpu.memory_space<vmem>>, vector<8x64xf32>,
    %c0_97 = arith.constant 0 : index
    %c0_98 = arith.constant 0 : index
    %155 = vector.load %arg14[%c0_97, %c0_98] : memref<8x64xf32, #tpu.memory_space<vmem>>, vector<8x64xf32>
    %cst_99 = arith.constant 1.000000e+00 : f32
    %156 = vector.broadcast %cst_99 : f32 to vector<8x64xf32>
    %157 = arith.subf %144, %156 : vector<8x64xf32>
    %cst_100 = arith.constant 1.000000e+06 : f32
    %158 = vector.broadcast %cst_100 : f32 to vector<8x64xf32>
    %159 = arith.mulf %157, %158 : vector<8x64xf32>
    %160 = arith.addf %151, %159 : vector<8x64xf32>
    %161 = arith.maximumf %155, %160 : vector<8x64xf32>
    %c0_101 = arith.constant 0 : index
    %c0_102 = arith.constant 0 : index
    %162 = vector.load %arg14[%c0_101, %c0_102] : memref<8x64xf32, #tpu.memory_space<vmem>>, vector<8x64xf32>
    tpu.vector_store %arg14[%c0_101, %c0_102], %161 {strides = array<i32>} : memref<8x64xf32, #tpu.memory_space<vmem>>, vector<8x64xf32>,
    %c3_i32 = arith.constant 3 : i32
    %c8_i32_103 = arith.constant 8 : i32
    %163 = arith.muli %c3_i32, %c8_i32_103 : i32
    %164 = tpu.assume_multiple %163, 8 : i32
    %c7_i32_104 = arith.constant 7 : i32
    %165 = arith.subi %c7_i32_104, %c3_i32 : i32
    %c8_i32_105 = arith.constant 8 : i32
    %166 = arith.muli %165, %c8_i32_105 : i32
    %167 = tpu.assume_multiple %166, 8 : i32
    %168 = arith.index_cast %164 : i32 to index
    %c0_106 = arith.constant 0 : index
    %169 = vector.load %arg11[%168, %c0_106] : memref<64x256xf32, #tpu.memory_space<vmem>>, vector<8x256xf32>
    %170 = arith.index_cast %167 : i32 to index
    %c0_107 = arith.constant 0 : index
    %171 = vector.load %arg11[%170, %c0_107] : memref<64x256xf32, #tpu.memory_space<vmem>>, vector<8x256xf32>
    %172 = arith.select %15, %171, %169 : vector<8x256xi1>, vector<8x256xf32>
    %c0_108 = arith.constant 0 : index
    %c0_109 = arith.constant 0 : index
    %173 = vector.load %arg12[%c0_108, %c0_109] : memref<8x64xf32, #tpu.memory_space<vmem>>, vector<8x64xf32>
    %c0_110 = arith.constant 0 : index
    %c0_111 = arith.constant 0 : index
    %174 = vector.load %arg8[%c0_110, %c0_111] : memref<64x256xf32, #tpu.memory_space<vmem>>, vector<64x256xf32>
    %cst_112 = arith.constant dense<0.000000e+00> : vector<8x256xf32>
    %175 = tpu.matmul %173, %174, %cst_112 {dimension_numbers = #tpu.dot_dimension_numbers<[1], [0], [0], [1], [0, 0, 1, 1], [], []>} : vector<8x64xf32>, vector<64x256xf32>, vector<8x256xf32> -> vector<8x256xf32>
    %176 = arith.addf %172, %175 : vector<8x256xf32>
    %177 = vector.extract_strided_slice %176 {offsets = [0, 0], sizes = [8, 192], strides = [1, 1]} : vector<8x256xf32> to vector<8x192xf32>
    %cst_113 = arith.constant 5.000000e-01 : f32
    %178 = vector.broadcast %cst_113 : f32 to vector<8x192xf32>
    %179 = arith.mulf %178, %177 : vector<8x192xf32>
    %180 = math.tanh %179 : vector<8x192xf32>
    %cst_114 = arith.constant 5.000000e-01 : f32
    %181 = vector.broadcast %cst_114 : f32 to vector<8x192xf32>
    %182 = arith.mulf %181, %180 : vector<8x192xf32>
    %cst_115 = arith.constant 5.000000e-01 : f32
    %183 = vector.broadcast %cst_115 : f32 to vector<8x192xf32>
    %184 = arith.addf %182, %183 : vector<8x192xf32>
    %185 = vector.extract_strided_slice %176 {offsets = [0, 192], sizes = [8, 64], strides = [1, 1]} : vector<8x256xf32> to vector<8x64xf32>
    %186 = math.tanh %185 : vector<8x64xf32>
    %187 = vector.extract_strided_slice %184 {offsets = [0, 0], sizes = [8, 64], strides = [1, 1]} : vector<8x192xf32> to vector<8x64xf32>
    %188 = vector.extract_strided_slice %184 {offsets = [0, 64], sizes = [8, 64], strides = [1, 1]} : vector<8x192xf32> to vector<8x64xf32>
    %189 = vector.extract_strided_slice %184 {offsets = [0, 128], sizes = [8, 64], strides = [1, 1]} : vector<8x192xf32> to vector<8x64xf32>
    %190 = arith.index_cast %164 : i32 to index
    %c0_116 = arith.constant 0 : index
    %191 = vector.load %arg7[%190, %c0_116] : memref<64x64xf32, #tpu.memory_space<vmem>>, vector<8x64xf32>
    %c0_117 = arith.constant 0 : index
    %c0_118 = arith.constant 0 : index
    %192 = vector.load %arg13[%c0_117, %c0_118] : memref<8x64xf32, #tpu.memory_space<vmem>>, vector<8x64xf32>
    %193 = arith.mulf %188, %192 : vector<8x64xf32>
    %194 = arith.mulf %187, %186 : vector<8x64xf32>
    %195 = arith.addf %193, %194 : vector<8x64xf32>
    %196 = math.tanh %195 : vector<8x64xf32>
    %197 = arith.mulf %189, %196 : vector<8x64xf32>
    %198 = arith.mulf %197, %191 : vector<8x64xf32>
    %199 = arith.mulf %195, %191 : vector<8x64xf32>
    %c0_119 = arith.constant 0 : index
    %c0_120 = arith.constant 0 : index
    %200 = vector.load %arg13[%c0_119, %c0_120] : memref<8x64xf32, #tpu.memory_space<vmem>>, vector<8x64xf32>
    tpu.vector_store %arg13[%c0_119, %c0_120], %199 {strides = array<i32>} : memref<8x64xf32, #tpu.memory_space<vmem>>, vector<8x64xf32>,
    %c0_121 = arith.constant 0 : index
    %c0_122 = arith.constant 0 : index
    %201 = vector.load %arg12[%c0_121, %c0_122] : memref<8x64xf32, #tpu.memory_space<vmem>>, vector<8x64xf32>
    tpu.vector_store %arg12[%c0_121, %c0_122], %198 {strides = array<i32>} : memref<8x64xf32, #tpu.memory_space<vmem>>, vector<8x64xf32>,
    %c0_123 = arith.constant 0 : index
    %c0_124 = arith.constant 0 : index
    %202 = vector.load %arg14[%c0_123, %c0_124] : memref<8x64xf32, #tpu.memory_space<vmem>>, vector<8x64xf32>
    %cst_125 = arith.constant 1.000000e+00 : f32
    %203 = vector.broadcast %cst_125 : f32 to vector<8x64xf32>
    %204 = arith.subf %191, %203 : vector<8x64xf32>
    %cst_126 = arith.constant 1.000000e+06 : f32
    %205 = vector.broadcast %cst_126 : f32 to vector<8x64xf32>
    %206 = arith.mulf %204, %205 : vector<8x64xf32>
    %207 = arith.addf %198, %206 : vector<8x64xf32>
    %208 = arith.maximumf %202, %207 : vector<8x64xf32>
    %c0_127 = arith.constant 0 : index
    %c0_128 = arith.constant 0 : index
    %209 = vector.load %arg14[%c0_127, %c0_128] : memref<8x64xf32, #tpu.memory_space<vmem>>, vector<8x64xf32>
    tpu.vector_store %arg14[%c0_127, %c0_128], %208 {strides = array<i32>} : memref<8x64xf32, #tpu.memory_space<vmem>>, vector<8x64xf32>,
    %c4_i32 = arith.constant 4 : i32
    %c8_i32_129 = arith.constant 8 : i32
    %210 = arith.muli %c4_i32, %c8_i32_129 : i32
    %211 = tpu.assume_multiple %210, 8 : i32
    %c7_i32_130 = arith.constant 7 : i32
    %212 = arith.subi %c7_i32_130, %c4_i32 : i32
    %c8_i32_131 = arith.constant 8 : i32
    %213 = arith.muli %212, %c8_i32_131 : i32
    %214 = tpu.assume_multiple %213, 8 : i32
    %215 = arith.index_cast %211 : i32 to index
    %c0_132 = arith.constant 0 : index
    %216 = vector.load %arg11[%215, %c0_132] : memref<64x256xf32, #tpu.memory_space<vmem>>, vector<8x256xf32>
    %217 = arith.index_cast %214 : i32 to index
    %c0_133 = arith.constant 0 : index
    %218 = vector.load %arg11[%217, %c0_133] : memref<64x256xf32, #tpu.memory_space<vmem>>, vector<8x256xf32>
    %219 = arith.select %15, %218, %216 : vector<8x256xi1>, vector<8x256xf32>
    %c0_134 = arith.constant 0 : index
    %c0_135 = arith.constant 0 : index
    %220 = vector.load %arg12[%c0_134, %c0_135] : memref<8x64xf32, #tpu.memory_space<vmem>>, vector<8x64xf32>
    %c0_136 = arith.constant 0 : index
    %c0_137 = arith.constant 0 : index
    %221 = vector.load %arg8[%c0_136, %c0_137] : memref<64x256xf32, #tpu.memory_space<vmem>>, vector<64x256xf32>
    %cst_138 = arith.constant dense<0.000000e+00> : vector<8x256xf32>
    %222 = tpu.matmul %220, %221, %cst_138 {dimension_numbers = #tpu.dot_dimension_numbers<[1], [0], [0], [1], [0, 0, 1, 1], [], []>} : vector<8x64xf32>, vector<64x256xf32>, vector<8x256xf32> -> vector<8x256xf32>
    %223 = arith.addf %219, %222 : vector<8x256xf32>
    %224 = vector.extract_strided_slice %223 {offsets = [0, 0], sizes = [8, 192], strides = [1, 1]} : vector<8x256xf32> to vector<8x192xf32>
    %cst_139 = arith.constant 5.000000e-01 : f32
    %225 = vector.broadcast %cst_139 : f32 to vector<8x192xf32>
    %226 = arith.mulf %225, %224 : vector<8x192xf32>
    %227 = math.tanh %226 : vector<8x192xf32>
    %cst_140 = arith.constant 5.000000e-01 : f32
    %228 = vector.broadcast %cst_140 : f32 to vector<8x192xf32>
    %229 = arith.mulf %228, %227 : vector<8x192xf32>
    %cst_141 = arith.constant 5.000000e-01 : f32
    %230 = vector.broadcast %cst_141 : f32 to vector<8x192xf32>
    %231 = arith.addf %229, %230 : vector<8x192xf32>
    %232 = vector.extract_strided_slice %223 {offsets = [0, 192], sizes = [8, 64], strides = [1, 1]} : vector<8x256xf32> to vector<8x64xf32>
    %233 = math.tanh %232 : vector<8x64xf32>
    %234 = vector.extract_strided_slice %231 {offsets = [0, 0], sizes = [8, 64], strides = [1, 1]} : vector<8x192xf32> to vector<8x64xf32>
    %235 = vector.extract_strided_slice %231 {offsets = [0, 64], sizes = [8, 64], strides = [1, 1]} : vector<8x192xf32> to vector<8x64xf32>
    %236 = vector.extract_strided_slice %231 {offsets = [0, 128], sizes = [8, 64], strides = [1, 1]} : vector<8x192xf32> to vector<8x64xf32>
    %237 = arith.index_cast %211 : i32 to index
    %c0_142 = arith.constant 0 : index
    %238 = vector.load %arg7[%237, %c0_142] : memref<64x64xf32, #tpu.memory_space<vmem>>, vector<8x64xf32>
    %c0_143 = arith.constant 0 : index
    %c0_144 = arith.constant 0 : index
    %239 = vector.load %arg13[%c0_143, %c0_144] : memref<8x64xf32, #tpu.memory_space<vmem>>, vector<8x64xf32>
    %240 = arith.mulf %235, %239 : vector<8x64xf32>
    %241 = arith.mulf %234, %233 : vector<8x64xf32>
    %242 = arith.addf %240, %241 : vector<8x64xf32>
    %243 = math.tanh %242 : vector<8x64xf32>
    %244 = arith.mulf %236, %243 : vector<8x64xf32>
    %245 = arith.mulf %244, %238 : vector<8x64xf32>
    %246 = arith.mulf %242, %238 : vector<8x64xf32>
    %c0_145 = arith.constant 0 : index
    %c0_146 = arith.constant 0 : index
    %247 = vector.load %arg13[%c0_145, %c0_146] : memref<8x64xf32, #tpu.memory_space<vmem>>, vector<8x64xf32>
    tpu.vector_store %arg13[%c0_145, %c0_146], %246 {strides = array<i32>} : memref<8x64xf32, #tpu.memory_space<vmem>>, vector<8x64xf32>,
    %c0_147 = arith.constant 0 : index
    %c0_148 = arith.constant 0 : index
    %248 = vector.load %arg12[%c0_147, %c0_148] : memref<8x64xf32, #tpu.memory_space<vmem>>, vector<8x64xf32>
    tpu.vector_store %arg12[%c0_147, %c0_148], %245 {strides = array<i32>} : memref<8x64xf32, #tpu.memory_space<vmem>>, vector<8x64xf32>,
    %c0_149 = arith.constant 0 : index
    %c0_150 = arith.constant 0 : index
    %249 = vector.load %arg14[%c0_149, %c0_150] : memref<8x64xf32, #tpu.memory_space<vmem>>, vector<8x64xf32>
    %cst_151 = arith.constant 1.000000e+00 : f32
    %250 = vector.broadcast %cst_151 : f32 to vector<8x64xf32>
    %251 = arith.subf %238, %250 : vector<8x64xf32>
    %cst_152 = arith.constant 1.000000e+06 : f32
    %252 = vector.broadcast %cst_152 : f32 to vector<8x64xf32>
    %253 = arith.mulf %251, %252 : vector<8x64xf32>
    %254 = arith.addf %245, %253 : vector<8x64xf32>
    %255 = arith.maximumf %249, %254 : vector<8x64xf32>
    %c0_153 = arith.constant 0 : index
    %c0_154 = arith.constant 0 : index
    %256 = vector.load %arg14[%c0_153, %c0_154] : memref<8x64xf32, #tpu.memory_space<vmem>>, vector<8x64xf32>
    tpu.vector_store %arg14[%c0_153, %c0_154], %255 {strides = array<i32>} : memref<8x64xf32, #tpu.memory_space<vmem>>, vector<8x64xf32>,
    %c5_i32 = arith.constant 5 : i32
    %c8_i32_155 = arith.constant 8 : i32
    %257 = arith.muli %c5_i32, %c8_i32_155 : i32
    %258 = tpu.assume_multiple %257, 8 : i32
    %c7_i32_156 = arith.constant 7 : i32
    %259 = arith.subi %c7_i32_156, %c5_i32 : i32
    %c8_i32_157 = arith.constant 8 : i32
    %260 = arith.muli %259, %c8_i32_157 : i32
    %261 = tpu.assume_multiple %260, 8 : i32
    %262 = arith.index_cast %258 : i32 to index
    %c0_158 = arith.constant 0 : index
    %263 = vector.load %arg11[%262, %c0_158] : memref<64x256xf32, #tpu.memory_space<vmem>>, vector<8x256xf32>
    %264 = arith.index_cast %261 : i32 to index
    %c0_159 = arith.constant 0 : index
    %265 = vector.load %arg11[%264, %c0_159] : memref<64x256xf32, #tpu.memory_space<vmem>>, vector<8x256xf32>
    %266 = arith.select %15, %265, %263 : vector<8x256xi1>, vector<8x256xf32>
    %c0_160 = arith.constant 0 : index
    %c0_161 = arith.constant 0 : index
    %267 = vector.load %arg12[%c0_160, %c0_161] : memref<8x64xf32, #tpu.memory_space<vmem>>, vector<8x64xf32>
    %c0_162 = arith.constant 0 : index
    %c0_163 = arith.constant 0 : index
    %268 = vector.load %arg8[%c0_162, %c0_163] : memref<64x256xf32, #tpu.memory_space<vmem>>, vector<64x256xf32>
    %cst_164 = arith.constant dense<0.000000e+00> : vector<8x256xf32>
    %269 = tpu.matmul %267, %268, %cst_164 {dimension_numbers = #tpu.dot_dimension_numbers<[1], [0], [0], [1], [0, 0, 1, 1], [], []>} : vector<8x64xf32>, vector<64x256xf32>, vector<8x256xf32> -> vector<8x256xf32>
    %270 = arith.addf %266, %269 : vector<8x256xf32>
    %271 = vector.extract_strided_slice %270 {offsets = [0, 0], sizes = [8, 192], strides = [1, 1]} : vector<8x256xf32> to vector<8x192xf32>
    %cst_165 = arith.constant 5.000000e-01 : f32
    %272 = vector.broadcast %cst_165 : f32 to vector<8x192xf32>
    %273 = arith.mulf %272, %271 : vector<8x192xf32>
    %274 = math.tanh %273 : vector<8x192xf32>
    %cst_166 = arith.constant 5.000000e-01 : f32
    %275 = vector.broadcast %cst_166 : f32 to vector<8x192xf32>
    %276 = arith.mulf %275, %274 : vector<8x192xf32>
    %cst_167 = arith.constant 5.000000e-01 : f32
    %277 = vector.broadcast %cst_167 : f32 to vector<8x192xf32>
    %278 = arith.addf %276, %277 : vector<8x192xf32>
    %279 = vector.extract_strided_slice %270 {offsets = [0, 192], sizes = [8, 64], strides = [1, 1]} : vector<8x256xf32> to vector<8x64xf32>
    %280 = math.tanh %279 : vector<8x64xf32>
    %281 = vector.extract_strided_slice %278 {offsets = [0, 0], sizes = [8, 64], strides = [1, 1]} : vector<8x192xf32> to vector<8x64xf32>
    %282 = vector.extract_strided_slice %278 {offsets = [0, 64], sizes = [8, 64], strides = [1, 1]} : vector<8x192xf32> to vector<8x64xf32>
    %283 = vector.extract_strided_slice %278 {offsets = [0, 128], sizes = [8, 64], strides = [1, 1]} : vector<8x192xf32> to vector<8x64xf32>
    %284 = arith.index_cast %258 : i32 to index
    %c0_168 = arith.constant 0 : index
    %285 = vector.load %arg7[%284, %c0_168] : memref<64x64xf32, #tpu.memory_space<vmem>>, vector<8x64xf32>
    %c0_169 = arith.constant 0 : index
    %c0_170 = arith.constant 0 : index
    %286 = vector.load %arg13[%c0_169, %c0_170] : memref<8x64xf32, #tpu.memory_space<vmem>>, vector<8x64xf32>
    %287 = arith.mulf %282, %286 : vector<8x64xf32>
    %288 = arith.mulf %281, %280 : vector<8x64xf32>
    %289 = arith.addf %287, %288 : vector<8x64xf32>
    %290 = math.tanh %289 : vector<8x64xf32>
    %291 = arith.mulf %283, %290 : vector<8x64xf32>
    %292 = arith.mulf %291, %285 : vector<8x64xf32>
    %293 = arith.mulf %289, %285 : vector<8x64xf32>
    %c0_171 = arith.constant 0 : index
    %c0_172 = arith.constant 0 : index
    %294 = vector.load %arg13[%c0_171, %c0_172] : memref<8x64xf32, #tpu.memory_space<vmem>>, vector<8x64xf32>
    tpu.vector_store %arg13[%c0_171, %c0_172], %293 {strides = array<i32>} : memref<8x64xf32, #tpu.memory_space<vmem>>, vector<8x64xf32>,
    %c0_173 = arith.constant 0 : index
    %c0_174 = arith.constant 0 : index
    %295 = vector.load %arg12[%c0_173, %c0_174] : memref<8x64xf32, #tpu.memory_space<vmem>>, vector<8x64xf32>
    tpu.vector_store %arg12[%c0_173, %c0_174], %292 {strides = array<i32>} : memref<8x64xf32, #tpu.memory_space<vmem>>, vector<8x64xf32>,
    %c0_175 = arith.constant 0 : index
    %c0_176 = arith.constant 0 : index
    %296 = vector.load %arg14[%c0_175, %c0_176] : memref<8x64xf32, #tpu.memory_space<vmem>>, vector<8x64xf32>
    %cst_177 = arith.constant 1.000000e+00 : f32
    %297 = vector.broadcast %cst_177 : f32 to vector<8x64xf32>
    %298 = arith.subf %285, %297 : vector<8x64xf32>
    %cst_178 = arith.constant 1.000000e+06 : f32
    %299 = vector.broadcast %cst_178 : f32 to vector<8x64xf32>
    %300 = arith.mulf %298, %299 : vector<8x64xf32>
    %301 = arith.addf %292, %300 : vector<8x64xf32>
    %302 = arith.maximumf %296, %301 : vector<8x64xf32>
    %c0_179 = arith.constant 0 : index
    %c0_180 = arith.constant 0 : index
    %303 = vector.load %arg14[%c0_179, %c0_180] : memref<8x64xf32, #tpu.memory_space<vmem>>, vector<8x64xf32>
    tpu.vector_store %arg14[%c0_179, %c0_180], %302 {strides = array<i32>} : memref<8x64xf32, #tpu.memory_space<vmem>>, vector<8x64xf32>,
    %c6_i32 = arith.constant 6 : i32
    %c8_i32_181 = arith.constant 8 : i32
    %304 = arith.muli %c6_i32, %c8_i32_181 : i32
    %305 = tpu.assume_multiple %304, 8 : i32
    %c7_i32_182 = arith.constant 7 : i32
    %306 = arith.subi %c7_i32_182, %c6_i32 : i32
    %c8_i32_183 = arith.constant 8 : i32
    %307 = arith.muli %306, %c8_i32_183 : i32
    %308 = tpu.assume_multiple %307, 8 : i32
    %309 = arith.index_cast %305 : i32 to index
    %c0_184 = arith.constant 0 : index
    %310 = vector.load %arg11[%309, %c0_184] : memref<64x256xf32, #tpu.memory_space<vmem>>, vector<8x256xf32>
    %311 = arith.index_cast %308 : i32 to index
    %c0_185 = arith.constant 0 : index
    %312 = vector.load %arg11[%311, %c0_185] : memref<64x256xf32, #tpu.memory_space<vmem>>, vector<8x256xf32>
    %313 = arith.select %15, %312, %310 : vector<8x256xi1>, vector<8x256xf32>
    %c0_186 = arith.constant 0 : index
    %c0_187 = arith.constant 0 : index
    %314 = vector.load %arg12[%c0_186, %c0_187] : memref<8x64xf32, #tpu.memory_space<vmem>>, vector<8x64xf32>
    %c0_188 = arith.constant 0 : index
    %c0_189 = arith.constant 0 : index
    %315 = vector.load %arg8[%c0_188, %c0_189] : memref<64x256xf32, #tpu.memory_space<vmem>>, vector<64x256xf32>
    %cst_190 = arith.constant dense<0.000000e+00> : vector<8x256xf32>
    %316 = tpu.matmul %314, %315, %cst_190 {dimension_numbers = #tpu.dot_dimension_numbers<[1], [0], [0], [1], [0, 0, 1, 1], [], []>} : vector<8x64xf32>, vector<64x256xf32>, vector<8x256xf32> -> vector<8x256xf32>
    %317 = arith.addf %313, %316 : vector<8x256xf32>
    %318 = vector.extract_strided_slice %317 {offsets = [0, 0], sizes = [8, 192], strides = [1, 1]} : vector<8x256xf32> to vector<8x192xf32>
    %cst_191 = arith.constant 5.000000e-01 : f32
    %319 = vector.broadcast %cst_191 : f32 to vector<8x192xf32>
    %320 = arith.mulf %319, %318 : vector<8x192xf32>
    %321 = math.tanh %320 : vector<8x192xf32>
    %cst_192 = arith.constant 5.000000e-01 : f32
    %322 = vector.broadcast %cst_192 : f32 to vector<8x192xf32>
    %323 = arith.mulf %322, %321 : vector<8x192xf32>
    %cst_193 = arith.constant 5.000000e-01 : f32
    %324 = vector.broadcast %cst_193 : f32 to vector<8x192xf32>
    %325 = arith.addf %323, %324 : vector<8x192xf32>
    %326 = vector.extract_strided_slice %317 {offsets = [0, 192], sizes = [8, 64], strides = [1, 1]} : vector<8x256xf32> to vector<8x64xf32>
    %327 = math.tanh %326 : vector<8x64xf32>
    %328 = vector.extract_strided_slice %325 {offsets = [0, 0], sizes = [8, 64], strides = [1, 1]} : vector<8x192xf32> to vector<8x64xf32>
    %329 = vector.extract_strided_slice %325 {offsets = [0, 64], sizes = [8, 64], strides = [1, 1]} : vector<8x192xf32> to vector<8x64xf32>
    %330 = vector.extract_strided_slice %325 {offsets = [0, 128], sizes = [8, 64], strides = [1, 1]} : vector<8x192xf32> to vector<8x64xf32>
    %331 = arith.index_cast %305 : i32 to index
    %c0_194 = arith.constant 0 : index
    %332 = vector.load %arg7[%331, %c0_194] : memref<64x64xf32, #tpu.memory_space<vmem>>, vector<8x64xf32>
    %c0_195 = arith.constant 0 : index
    %c0_196 = arith.constant 0 : index
    %333 = vector.load %arg13[%c0_195, %c0_196] : memref<8x64xf32, #tpu.memory_space<vmem>>, vector<8x64xf32>
    %334 = arith.mulf %329, %333 : vector<8x64xf32>
    %335 = arith.mulf %328, %327 : vector<8x64xf32>
    %336 = arith.addf %334, %335 : vector<8x64xf32>
    %337 = math.tanh %336 : vector<8x64xf32>
    %338 = arith.mulf %330, %337 : vector<8x64xf32>
    %339 = arith.mulf %338, %332 : vector<8x64xf32>
    %340 = arith.mulf %336, %332 : vector<8x64xf32>
    %c0_197 = arith.constant 0 : index
    %c0_198 = arith.constant 0 : index
    %341 = vector.load %arg13[%c0_197, %c0_198] : memref<8x64xf32, #tpu.memory_space<vmem>>, vector<8x64xf32>
    tpu.vector_store %arg13[%c0_197, %c0_198], %340 {strides = array<i32>} : memref<8x64xf32, #tpu.memory_space<vmem>>, vector<8x64xf32>,
    %c0_199 = arith.constant 0 : index
    %c0_200 = arith.constant 0 : index
    %342 = vector.load %arg12[%c0_199, %c0_200] : memref<8x64xf32, #tpu.memory_space<vmem>>, vector<8x64xf32>
    tpu.vector_store %arg12[%c0_199, %c0_200], %339 {strides = array<i32>} : memref<8x64xf32, #tpu.memory_space<vmem>>, vector<8x64xf32>,
    %c0_201 = arith.constant 0 : index
    %c0_202 = arith.constant 0 : index
    %343 = vector.load %arg14[%c0_201, %c0_202] : memref<8x64xf32, #tpu.memory_space<vmem>>, vector<8x64xf32>
    %cst_203 = arith.constant 1.000000e+00 : f32
    %344 = vector.broadcast %cst_203 : f32 to vector<8x64xf32>
    %345 = arith.subf %332, %344 : vector<8x64xf32>
    %cst_204 = arith.constant 1.000000e+06 : f32
    %346 = vector.broadcast %cst_204 : f32 to vector<8x64xf32>
    %347 = arith.mulf %345, %346 : vector<8x64xf32>
    %348 = arith.addf %339, %347 : vector<8x64xf32>
    %349 = arith.maximumf %343, %348 : vector<8x64xf32>
    %c0_205 = arith.constant 0 : index
    %c0_206 = arith.constant 0 : index
    %350 = vector.load %arg14[%c0_205, %c0_206] : memref<8x64xf32, #tpu.memory_space<vmem>>, vector<8x64xf32>
    tpu.vector_store %arg14[%c0_205, %c0_206], %349 {strides = array<i32>} : memref<8x64xf32, #tpu.memory_space<vmem>>, vector<8x64xf32>,
    %c7_i32_207 = arith.constant 7 : i32
    %c8_i32_208 = arith.constant 8 : i32
    %351 = arith.muli %c7_i32_207, %c8_i32_208 : i32
    %352 = tpu.assume_multiple %351, 8 : i32
    %c7_i32_209 = arith.constant 7 : i32
    %353 = arith.subi %c7_i32_209, %c7_i32_207 : i32
    %c8_i32_210 = arith.constant 8 : i32
    %354 = arith.muli %353, %c8_i32_210 : i32
    %355 = tpu.assume_multiple %354, 8 : i32
    %356 = arith.index_cast %352 : i32 to index
    %c0_211 = arith.constant 0 : index
    %357 = vector.load %arg11[%356, %c0_211] : memref<64x256xf32, #tpu.memory_space<vmem>>, vector<8x256xf32>
    %358 = arith.index_cast %355 : i32 to index
    %c0_212 = arith.constant 0 : index
    %359 = vector.load %arg11[%358, %c0_212] : memref<64x256xf32, #tpu.memory_space<vmem>>, vector<8x256xf32>
    %360 = arith.select %15, %359, %357 : vector<8x256xi1>, vector<8x256xf32>
    %c0_213 = arith.constant 0 : index
    %c0_214 = arith.constant 0 : index
    %361 = vector.load %arg12[%c0_213, %c0_214] : memref<8x64xf32, #tpu.memory_space<vmem>>, vector<8x64xf32>
    %c0_215 = arith.constant 0 : index
    %c0_216 = arith.constant 0 : index
    %362 = vector.load %arg8[%c0_215, %c0_216] : memref<64x256xf32, #tpu.memory_space<vmem>>, vector<64x256xf32>
    %cst_217 = arith.constant dense<0.000000e+00> : vector<8x256xf32>
    %363 = tpu.matmul %361, %362, %cst_217 {dimension_numbers = #tpu.dot_dimension_numbers<[1], [0], [0], [1], [0, 0, 1, 1], [], []>} : vector<8x64xf32>, vector<64x256xf32>, vector<8x256xf32> -> vector<8x256xf32>
    %364 = arith.addf %360, %363 : vector<8x256xf32>
    %365 = vector.extract_strided_slice %364 {offsets = [0, 0], sizes = [8, 192], strides = [1, 1]} : vector<8x256xf32> to vector<8x192xf32>
    %cst_218 = arith.constant 5.000000e-01 : f32
    %366 = vector.broadcast %cst_218 : f32 to vector<8x192xf32>
    %367 = arith.mulf %366, %365 : vector<8x192xf32>
    %368 = math.tanh %367 : vector<8x192xf32>
    %cst_219 = arith.constant 5.000000e-01 : f32
    %369 = vector.broadcast %cst_219 : f32 to vector<8x192xf32>
    %370 = arith.mulf %369, %368 : vector<8x192xf32>
    %cst_220 = arith.constant 5.000000e-01 : f32
    %371 = vector.broadcast %cst_220 : f32 to vector<8x192xf32>
    %372 = arith.addf %370, %371 : vector<8x192xf32>
    %373 = vector.extract_strided_slice %364 {offsets = [0, 192], sizes = [8, 64], strides = [1, 1]} : vector<8x256xf32> to vector<8x64xf32>
    %374 = math.tanh %373 : vector<8x64xf32>
    %375 = vector.extract_strided_slice %372 {offsets = [0, 0], sizes = [8, 64], strides = [1, 1]} : vector<8x192xf32> to vector<8x64xf32>
    %376 = vector.extract_strided_slice %372 {offsets = [0, 64], sizes = [8, 64], strides = [1, 1]} : vector<8x192xf32> to vector<8x64xf32>
    %377 = vector.extract_strided_slice %372 {offsets = [0, 128], sizes = [8, 64], strides = [1, 1]} : vector<8x192xf32> to vector<8x64xf32>
    %378 = arith.index_cast %352 : i32 to index
    %c0_221 = arith.constant 0 : index
    %379 = vector.load %arg7[%378, %c0_221] : memref<64x64xf32, #tpu.memory_space<vmem>>, vector<8x64xf32>
    %c0_222 = arith.constant 0 : index
    %c0_223 = arith.constant 0 : index
    %380 = vector.load %arg13[%c0_222, %c0_223] : memref<8x64xf32, #tpu.memory_space<vmem>>, vector<8x64xf32>
    %381 = arith.mulf %376, %380 : vector<8x64xf32>
    %382 = arith.mulf %375, %374 : vector<8x64xf32>
    %383 = arith.addf %381, %382 : vector<8x64xf32>
    %384 = math.tanh %383 : vector<8x64xf32>
    %385 = arith.mulf %377, %384 : vector<8x64xf32>
    %386 = arith.mulf %385, %379 : vector<8x64xf32>
    %387 = arith.mulf %383, %379 : vector<8x64xf32>
    %c0_224 = arith.constant 0 : index
    %c0_225 = arith.constant 0 : index
    %388 = vector.load %arg13[%c0_224, %c0_225] : memref<8x64xf32, #tpu.memory_space<vmem>>, vector<8x64xf32>
    tpu.vector_store %arg13[%c0_224, %c0_225], %387 {strides = array<i32>} : memref<8x64xf32, #tpu.memory_space<vmem>>, vector<8x64xf32>,
    %c0_226 = arith.constant 0 : index
    %c0_227 = arith.constant 0 : index
    %389 = vector.load %arg12[%c0_226, %c0_227] : memref<8x64xf32, #tpu.memory_space<vmem>>, vector<8x64xf32>
    tpu.vector_store %arg12[%c0_226, %c0_227], %386 {strides = array<i32>} : memref<8x64xf32, #tpu.memory_space<vmem>>, vector<8x64xf32>,
    %c0_228 = arith.constant 0 : index
    %c0_229 = arith.constant 0 : index
    %390 = vector.load %arg14[%c0_228, %c0_229] : memref<8x64xf32, #tpu.memory_space<vmem>>, vector<8x64xf32>
    %cst_230 = arith.constant 1.000000e+00 : f32
    %391 = vector.broadcast %cst_230 : f32 to vector<8x64xf32>
    %392 = arith.subf %379, %391 : vector<8x64xf32>
    %cst_231 = arith.constant 1.000000e+06 : f32
    %393 = vector.broadcast %cst_231 : f32 to vector<8x64xf32>
    %394 = arith.mulf %392, %393 : vector<8x64xf32>
    %395 = arith.addf %386, %394 : vector<8x64xf32>
    %396 = arith.maximumf %390, %395 : vector<8x64xf32>
    %c0_232 = arith.constant 0 : index
    %c0_233 = arith.constant 0 : index
    %397 = vector.load %arg14[%c0_232, %c0_233] : memref<8x64xf32, #tpu.memory_space<vmem>>, vector<8x64xf32>
    tpu.vector_store %arg14[%c0_232, %c0_233], %396 {strides = array<i32>} : memref<8x64xf32, #tpu.memory_space<vmem>>, vector<8x64xf32>,
    %c8_i32_234 = arith.constant 8 : i32
    %c0_235 = arith.constant 0 : index
    %c0_236 = arith.constant 0 : index
    %398 = vector.load %arg14[%c0_235, %c0_236] : memref<8x64xf32, #tpu.memory_space<vmem>>, vector<8x64xf32>
    %c0_237 = arith.constant 0 : index
    %c0_238 = arith.constant 0 : index
    %399 = vector.load %arg9[%c0_237, %c0_238] : memref<64x5xf32, #tpu.memory_space<vmem>>, vector<64x5xf32>
    %cst_239 = arith.constant dense<0.000000e+00> : vector<8x5xf32>
    %400 = tpu.matmul %398, %399, %cst_239 {dimension_numbers = #tpu.dot_dimension_numbers<[1], [0], [0], [1], [0, 0, 1, 1], [], []>} : vector<8x64xf32>, vector<64x5xf32>, vector<8x5xf32> -> vector<8x5xf32>
    %c0_240 = arith.constant 0 : index
    %c0_241 = arith.constant 0 : index
    %401 = vector.load %arg10[%c0_240, %c0_241] : memref<8x5xf32, #tpu.memory_space<vmem>>, vector<8x5xf32>
    tpu.vector_store %arg10[%c0_240, %c0_241], %400 {strides = array<i32>} : memref<8x5xf32, #tpu.memory_space<vmem>>, vector<8x5xf32>,
    return
  }
}

</mosaic_0001>

<llo_original>
// kernel: bilstm_model_forward.1
$region0: #{bilstm_model_forward.1}
  #allocation0 [shape = 'u32[]', space=smem, size = 0x4, offset = 0x4, fixed_abs, tag = 'smem constant byte address 0x4 - core index']
  #allocation1 [shape = 'u32[72,128]{1,0:T(1,128)}', space=vmem, size = 0x9000, scoped, tag = 'internal scratch']
  #allocation2 [shape = 'f32[64,256]{1,0:T(8,128)}', space=vmem, size = 0x10000, scoped, tag = 'scratch operand']
  #allocation3 [shape = 'f32[8,64]{1,0:T(8,128)}', space=vmem, size = 0x1000, scoped, tag = 'scratch operand']
  #allocation4 [shape = 'f32[8,64]{1,0:T(8,128)}', space=vmem, size = 0x1000, scoped, tag = 'scratch operand']
  #allocation5 [shape = 'f32[8,64]{1,0:T(8,128)}', space=vmem, size = 0x1000, scoped, tag = 'scratch operand']
  %s0 = inlined_call_operand.vmem [shape: f32[64,32], index: 0, kind: input, shape index: {}]
  %s1 = inlined_call_operand.vmem [shape: f32[64,240], index: 1, kind: input, shape index: {}]
  %s2 = inlined_call_operand.vmem [shape: f32[240,32], index: 2, kind: input, shape index: {}]
  %s3 = inlined_call_operand.vmem [shape: f32[32,256], index: 3, kind: input, shape index: {}]
  %s4 = inlined_call_operand.vmem [shape: f32[32,256], index: 4, kind: input, shape index: {}]
  %s5 = inlined_call_operand.vmem [shape: f32[1,256], index: 5, kind: input, shape index: {}]
  %s6 = inlined_call_operand.vmem [shape: f32[8,256], index: 6, kind: input, shape index: {}]
  %s7 = inlined_call_operand.vmem [shape: f32[64,64], index: 7, kind: input, shape index: {}]
  %s8 = inlined_call_operand.vmem [shape: f32[64,256], index: 8, kind: input, shape index: {}]
  %s9 = inlined_call_operand.vmem [shape: f32[64,5], index: 9, kind: input, shape index: {}]
  %s10 = inlined_call_operand.vmem [shape: f32[8,5], index: 10, kind: output, shape index: {}]
  %s11 = sld [smem:[#allocation0]]
  $region50: #{bilstm_model_forward.1} parent=0
    _
  %s13 = ssub.s32 1, %s11
  %s14 = scalar_select 0, %s13, %s11
  // Predicated region
  $region2: #{bilstm_model_forward.1} parent=0 // pred_check
    _
  $region3: #{bilstm_model_forward.1} parent=0 // pred_check_branch
    %16 = sbr.rel (0) target = $region5
  $region4: #{bilstm_model_forward.1} parent=0 // pred_region
    _
  $region5: #{bilstm_model_forward.1} parent=0 // pred_fallthru
    _
  // Predicated region
  $region6: #{bilstm_model_forward.1} parent=0 // pred_check
    _
  $region7: #{bilstm_model_forward.1} parent=0 // pred_check_branch
    %18 = sbr.rel (0) target = $region9
  $region8: #{bilstm_model_forward.1} parent=0 // pred_region
    _
  $region9: #{bilstm_model_forward.1} parent=0 // pred_fallthru
    _
  // Predicated region
  $region10: #{bilstm_model_forward.1} parent=0 // pred_check
    _
  $region11: #{bilstm_model_forward.1} parent=0 // pred_check_branch
    %20 = sbr.rel (0) target = $region13
  $region12: #{bilstm_model_forward.1} parent=0 // pred_region
    _
  $region13: #{bilstm_model_forward.1} parent=0 // pred_fallthru
    _
  // Predicated region
  $region14: #{bilstm_model_forward.1} parent=0 // pred_check
    _
  $region15: #{bilstm_model_forward.1} parent=0 // pred_check_branch
    %22 = sbr.rel (0) target = $region17
  $region16: #{bilstm_model_forward.1} parent=0 // pred_region
    _
  $region17: #{bilstm_model_forward.1} parent=0 // pred_fallthru
    _
  // Predicated region
  $region18: #{bilstm_model_forward.1} parent=0 // pred_check
    _
  $region19: #{bilstm_model_forward.1} parent=0 // pred_check_branch
    %24 = sbr.rel (0) target = $region21
  $region20: #{bilstm_model_forward.1} parent=0 // pred_region
    _
  $region21: #{bilstm_model_forward.1} parent=0 // pred_fallthru
    _
  // Predicated region
  $region22: #{bilstm_model_forward.1} parent=0 // pred_check
    _
  $region23: #{bilstm_model_forward.1} parent=0 // pred_check_branch
    %26 = sbr.rel (0) target = $region25
  $region24: #{bilstm_model_forward.1} parent=0 // pred_region
    _
  $region25: #{bilstm_model_forward.1} parent=0 // pred_fallthru
    _
  // Predicated region
  $region26: #{bilstm_model_forward.1} parent=0 // pred_check
    _
  $region27: #{bilstm_model_forward.1} parent=0 // pred_check_branch
    %28 = sbr.rel (0) target = $region29
  $region28: #{bilstm_model_forward.1} parent=0 // pred_region
    _
  $region29: #{bilstm_model_forward.1} parent=0 // pred_fallthru
    _
  // Predicated region
  $region30: #{bilstm_model_forward.1} parent=0 // pred_check
    _
  $region31: #{bilstm_model_forward.1} parent=0 // pred_check_branch
    %30 = sbr.rel (0) target = $region33
  $region32: #{bilstm_model_forward.1} parent=0 // pred_region
    _
  $region33: #{bilstm_model_forward.1} parent=0 // pred_fallthru
    _
  // Predicated region
  $region34: #{bilstm_model_forward.1} parent=0 // pred_check
    _
  $region35: #{bilstm_model_forward.1} parent=0 // pred_check_branch
    %32 = sbr.rel (0) target = $region37
  $region36: #{bilstm_model_forward.1} parent=0 // pred_region
    _
  $region37: #{bilstm_model_forward.1} parent=0 // pred_fallthru
    _
  // Predicated region
  $region38: #{bilstm_model_forward.1} parent=0 // pred_check
    _
  $region39: #{bilstm_model_forward.1} parent=0 // pred_check_branch
    %34 = sbr.rel (0) target = $region41
  $region40: #{bilstm_model_forward.1} parent=0 // pred_region
    _
  $region41: #{bilstm_model_forward.1} parent=0 // pred_fallthru
    _
  %v35 = vld [vmem:[%s1] sm:$0xff]
  %v36 = vld [vmem:[%s1 + $0x8] sm:$0xff]
  %v37 = vld [vmem:[%s1 + $0x10] sm:$0xff]
  %v38 = vld [vmem:[%s1 + $0x18] sm:$0xff]
  %v39 = vld [vmem:[%s1 + $0x20] sm:$0xff]
  %v40 = vld [vmem:[%s1 + $0x28] sm:$0xff]
  %v41 = vld [vmem:[%s1 + $0x30] sm:$0xff]
  %v42 = vld [vmem:[%s1 + $0x38] sm:$0xff]
  %v43 = vld [vmem:[%s1 + $0x40] sm:$0xff]
  %v44 = vld [vmem:[%s1 + $0x48] sm:$0xff]
  %v45 = vld [vmem:[%s1 + $0x50] sm:$0xff]
  %v46 = vld [vmem:[%s1 + $0x58] sm:$0xff]
  %v47 = vld [vmem:[%s1 + $0x60] sm:$0xff]
  %v48 = vld [vmem:[%s1 + $0x68] sm:$0xff]
  %v49 = vld [vmem:[%s1 + $0x70] sm:$0xff]
  %v50 = vld [vmem:[%s1 + $0x78] sm:$0xff]
  %v51 = vld [vmem:[%s2] sm:$0xff]
  %v52 = vld [vmem:[%s2 + $0x8] sm:$0xff]
  %v53 = vld [vmem:[%s2 + $0x10] sm:$0xff]
  %v54 = vld [vmem:[%s2 + $0x18] sm:$0xff]
  %v55 = vld [vmem:[%s2 + $0x20] sm:$0xff]
  %v56 = vld [vmem:[%s2 + $0x28] sm:$0xff]
  %v57 = vld [vmem:[%s2 + $0x30] sm:$0xff]
  %v58 = vld [vmem:[%s2 + $0x38] sm:$0xff]
  %v59 = vld [vmem:[%s2 + $0x40] sm:$0xff]
  %v60 = vld [vmem:[%s2 + $0x48] sm:$0xff]
  %v61 = vld [vmem:[%s2 + $0x50] sm:$0xff]
  %v62 = vld [vmem:[%s2 + $0x58] sm:$0xff]
  %v63 = vld [vmem:[%s2 + $0x60] sm:$0xff]
  %v64 = vld [vmem:[%s2 + $0x68] sm:$0xff]
  %v65 = vld [vmem:[%s2 + $0x70] sm:$0xff]
  %v66 = vld [vmem:[%s2 + $0x78] sm:$0xff]
  %v67 = vld [vmem:[%s2 + $0x80] sm:$0xff]
  %v68 = vld [vmem:[%s2 + $0x88] sm:$0xff]
  %v69 = vld [vmem:[%s2 + $0x90] sm:$0xff]
  %v70 = vld [vmem:[%s2 + $0x98] sm:$0xff]
  %v71 = vld [vmem:[%s2 + $0xa0] sm:$0xff]
  %v72 = vld [vmem:[%s2 + $0xa8] sm:$0xff]
  %v73 = vld [vmem:[%s2 + $0xb0] sm:$0xff]
  %v74 = vld [vmem:[%s2 + $0xb8] sm:$0xff]
  %v75 = vld [vmem:[%s2 + $0xc0] sm:$0xff]
  %v76 = vld [vmem:[%s2 + $0xc8] sm:$0xff]
  %v77 = vld [vmem:[%s2 + $0xd0] sm:$0xff]
  %v78 = vld [vmem:[%s2 + $0xd8] sm:$0xff]
  %v79 = vld [vmem:[%s2 + $0xe0] sm:$0xff]
  %v80 = vld [vmem:[%s2 + $0xe8] sm:$0xff]
  %vm81 = vcmask 916480
  %v83 = vsel %vm81, %v36, 0
  %v86 = vsel %vm81, %v38, 0
  %v89 = vsel %vm81, %v40, 0
  %v92 = vsel %vm81, %v42, 0
  %v95 = vsel %vm81, %v44, 0
  %v98 = vsel %vm81, %v46, 0
  %v101 = vsel %vm81, %v48, 0
  %v104 = vsel %vm81, %v50, 0
  %106 = vmatpush.msra.mxu0 %v66
  %107 = vmatpush.msra.mxu0 %v65
  %108 = vmatpush.msra.mxu0 %v64
  %109 = vmatpush.msra.mxu0 %v63
  %110 = vmatpush.msra.mxu0 %v62
  %111 = vmatpush.msra.mxu0 %v61
  %112 = vmatpush.msra.mxu0 %v60
  %113 = vmatpush.msra.mxu0 %v59
  %114 = vmatpush.msra.mxu0 %v58
  %115 = vmatpush.msra.mxu0 %v57
  %116 = vmatpush.msra.mxu0 %v56
  %117 = vmatpush.msra.mxu0 %v55
  %118 = vmatpush.msra.mxu0 %v54
  %119 = vmatpush.msra.mxu0 %v53
  %120 = vmatpush.msra.mxu0 %v52
  %121 = vmatpush.msra.mxu0 %v51
  %122 = vmatmul.f32.gmra.mxu0 %v35
  %v123 = vpop.f32.mrf.mxu0
  %v124 = vadd.f32 0.0, %v123
  %125 = vmatmul.f32.gmra.mxu0 %v37
  %v126 = vpop.f32.mrf.mxu0
  %v127 = vadd.f32 0.0, %v126
  %128 = vmatmul.f32.gmra.mxu0 %v39
  %v129 = vpop.f32.mrf.mxu0
  %v130 = vadd.f32 0.0, %v129
  %131 = vmatmul.f32.gmra.mxu0 %v41
  %v132 = vpop.f32.mrf.mxu0
  %v133 = vadd.f32 0.0, %v132
  %134 = vmatmul.f32.gmra.mxu0 %v43
  %v135 = vpop.f32.mrf.mxu0
  %v136 = vadd.f32 0.0, %v135
  %137 = vmatmul.f32.gmra.mxu0 %v45
  %v138 = vpop.f32.mrf.mxu0
  %v139 = vadd.f32 0.0, %v138
  %140 = vmatmul.f32.gmra.mxu0 %v47
  %v141 = vpop.f32.mrf.mxu0
  %v142 = vadd.f32 0.0, %v141
  %143 = vmatmul.f32.gmra.mxu0 %v49
  %v144 = vpop.f32.mrf.mxu0
  %v145 = vadd.f32 0.0, %v144
  %146 = vdwg.mxu0
  %147 = vmatpush.msra.mxu0 0.0
  %148 = vmatpush.msra.mxu0 0.0
  %149 = vmatpush.msra.mxu0 %v80
  %150 = vmatpush.msra.mxu0 %v79
  %151 = vmatpush.msra.mxu0 %v78
  %152 = vmatpush.msra.mxu0 %v77
  %153 = vmatpush.msra.mxu0 %v76
  %154 = vmatpush.msra.mxu0 %v75
  %155 = vmatpush.msra.mxu0 %v74
  %156 = vmatpush.msra.mxu0 %v73
  %157 = vmatpush.msra.mxu0 %v72
  %158 = vmatpush.msra.mxu0 %v71
  %159 = vmatpush.msra.mxu0 %v70
  %160 = vmatpush.msra.mxu0 %v69
  %161 = vmatpush.msra.mxu0 %v68
  %162 = vmatpush.msra.mxu0 %v67
  %163 = vmatmul.f32.gmra.mxu0 %v83
  %v164 = vpop.f32.mrf.mxu0
  %v165 = vadd.f32 %v124, %v164
  %166 = vmatmul.f32.gmra.mxu0 %v86
  %v167 = vpop.f32.mrf.mxu0
  %v168 = vadd.f32 %v127, %v167
  %169 = vmatmul.f32.gmra.mxu0 %v89
  %v170 = vpop.f32.mrf.mxu0
  %v171 = vadd.f32 %v130, %v170
  %172 = vmatmul.f32.gmra.mxu0 %v92
  %v173 = vpop.f32.mrf.mxu0
  %v174 = vadd.f32 %v133, %v173
  %175 = vmatmul.f32.gmra.mxu0 %v95
  %v176 = vpop.f32.mrf.mxu0
  %v177 = vadd.f32 %v136, %v176
  %178 = vmatmul.f32.gmra.mxu0 %v98
  %v179 = vpop.f32.mrf.mxu0
  %v180 = vadd.f32 %v139, %v179
  %181 = vmatmul.f32.gmra.mxu0 %v101
  %v182 = vpop.f32.mrf.mxu0
  %v183 = vadd.f32 %v142, %v182
  %184 = vmatmul.f32.gmra.mxu0 %v104
  %v185 = vpop.f32.mrf.mxu0
  %v186 = vadd.f32 %v145, %v185
  %187 = vdwg.mxu0
  %v188 = vld [vmem:[%s0] sm:$0xff]
  %v189 = vld [vmem:[%s0 + $0x8] sm:$0xff]
  %v190 = vld [vmem:[%s0 + $0x10] sm:$0xff]
  %v191 = vld [vmem:[%s0 + $0x18] sm:$0xff]
  %v192 = vld [vmem:[%s0 + $0x20] sm:$0xff]
  %v193 = vld [vmem:[%s0 + $0x28] sm:$0xff]
  %v194 = vld [vmem:[%s0 + $0x30] sm:$0xff]
  %v195 = vld [vmem:[%s0 + $0x38] sm:$0xff]
  %v196 = vld [vmem:[%s3] sm:$0xff]
  %v197 = vld [vmem:[%s3 + $0x8] sm:$0xff]
  %v198 = vld [vmem:[%s3 + $0x10] sm:$0xff]
  %v199 = vld [vmem:[%s3 + $0x18] sm:$0xff]
  %v200 = vld [vmem:[%s3 + $0x20] sm:$0xff]
  %v201 = vld [vmem:[%s3 + $0x28] sm:$0xff]
  %v202 = vld [vmem:[%s3 + $0x30] sm:$0xff]
  %v203 = vld [vmem:[%s3 + $0x38] sm:$0xff]
  %v204 = vld [vmem:[%s4] sm:$0xff]
  %v205 = vld [vmem:[%s4 + $0x8] sm:$0xff]
  %v206 = vld [vmem:[%s4 + $0x10] sm:$0xff]
  %v207 = vld [vmem:[%s4 + $0x18] sm:$0xff]
  %v208 = vld [vmem:[%s4 + $0x20] sm:$0xff]
  %v209 = vld [vmem:[%s4 + $0x28] sm:$0xff]
  %v210 = vld [vmem:[%s4 + $0x30] sm:$0xff]
  %v211 = vld [vmem:[%s4 + $0x38] sm:$0xff]
  %vm212 = vcmask 261120
  %v214 = vsel %vm212, %v165, 0
  %v217 = vsel %vm212, %v168, 0
  %v220 = vsel %vm212, %v171, 0
  %v223 = vsel %vm212, %v174, 0
  %v226 = vsel %vm212, %v177, 0
  %v229 = vsel %vm212, %v180, 0
  %v232 = vsel %vm212, %v183, 0
  %v235 = vsel %vm212, %v186, 0
  %237 = vmatpush.msra.mxu0 0.0
  %238 = vmatpush.msra.mxu0 0.0
  %239 = vmatpush.msra.mxu0 0.0
  %240 = vmatpush.msra.mxu0 0.0
  %241 = vmatpush.msra.mxu0 0.0
  %242 = vmatpush.msra.mxu0 0.0
  %243 = vmatpush.msra.mxu0 0.0
  %244 = vmatpush.msra.mxu0 0.0
  %245 = vmatpush.msra.mxu0 0.0
  %246 = vmatpush.msra.mxu0 0.0
  %247 = vmatpush.msra.mxu0 0.0
  %248 = vmatpush.msra.mxu0 0.0
  %249 = vmatpush.msra.mxu0 %v210
  %250 = vmatpush.msra.mxu0 %v208
  %251 = vmatpush.msra.mxu0 %v206
  %252 = vmatpush.msra.mxu0 %v204
  %253 = vmatmul.f32.gmra.mxu0 %v214
  %v254 = vpop.f32.mrf.mxu0
  %v255 = vadd.f32 0.0, %v254
  %256 = vmatmul.f32.gmra.mxu0 %v217
  %v257 = vpop.f32.mrf.mxu0
  %v258 = vadd.f32 0.0, %v257
  %259 = vmatmul.f32.gmra.mxu0 %v220
  %v260 = vpop.f32.mrf.mxu0
  %v261 = vadd.f32 0.0, %v260
  %262 = vmatmul.f32.gmra.mxu0 %v223
  %v263 = vpop.f32.mrf.mxu0
  %v264 = vadd.f32 0.0, %v263
  %265 = vmatmul.f32.gmra.mxu0 %v226
  %v266 = vpop.f32.mrf.mxu0
  %v267 = vadd.f32 0.0, %v266
  %268 = vmatmul.f32.gmra.mxu0 %v229
  %v269 = vpop.f32.mrf.mxu0
  %v270 = vadd.f32 0.0, %v269
  %271 = vmatmul.f32.gmra.mxu0 %v232
  %v272 = vpop.f32.mrf.mxu0
  %v273 = vadd.f32 0.0, %v272
  %274 = vmatmul.f32.gmra.mxu0 %v235
  %v275 = vpop.f32.mrf.mxu0
  %v276 = vadd.f32 0.0, %v275
  %277 = vdwg.mxu0
  %278 = vmatpush.msra.mxu0 0.0
  %279 = vmatpush.msra.mxu0 0.0
  %280 = vmatpush.msra.mxu0 0.0
  %281 = vmatpush.msra.mxu0 0.0
  %282 = vmatpush.msra.mxu0 0.0
  %283 = vmatpush.msra.mxu0 0.0
  %284 = vmatpush.msra.mxu0 0.0
  %285 = vmatpush.msra.mxu0 0.0
  %286 = vmatpush.msra.mxu0 0.0
  %287 = vmatpush.msra.mxu0 0.0
  %288 = vmatpush.msra.mxu0 0.0
  %289 = vmatpush.msra.mxu0 0.0
  %290 = vmatpush.msra.mxu0 %v211
  %291 = vmatpush.msra.mxu0 %v209
  %292 = vmatpush.msra.mxu0 %v207
  %293 = vmatpush.msra.mxu0 %v205
  %294 = vmatmul.f32.gmra.mxu0 %v214
  %v295 = vpop.f32.mrf.mxu0
  %v296 = vadd.f32 0.0, %v295
  %297 = vmatmul.f32.gmra.mxu0 %v217
  %v298 = vpop.f32.mrf.mxu0
  %v299 = vadd.f32 0.0, %v298
  %300 = vmatmul.f32.gmra.mxu0 %v220
  %v301 = vpop.f32.mrf.mxu0
  %v302 = vadd.f32 0.0, %v301
  %303 = vmatmul.f32.gmra.mxu0 %v223
  %v304 = vpop.f32.mrf.mxu0
  %v305 = vadd.f32 0.0, %v304
  %306 = vmatmul.f32.gmra.mxu0 %v226
  %v307 = vpop.f32.mrf.mxu0
  %v308 = vadd.f32 0.0, %v307
  %309 = vmatmul.f32.gmra.mxu0 %v229
  %v310 = vpop.f32.mrf.mxu0
  %v311 = vadd.f32 0.0, %v310
  %312 = vmatmul.f32.gmra.mxu0 %v232
  %v313 = vpop.f32.mrf.mxu0
  %v314 = vadd.f32 0.0, %v313
  %315 = vmatmul.f32.gmra.mxu0 %v235
  %v316 = vpop.f32.mrf.mxu0
  %v317 = vadd.f32 0.0, %v316
  %318 = vdwg.mxu0
  %v320 = vsel %vm212, %v188, 0
  %v323 = vsel %vm212, %v189, 0
  %v326 = vsel %vm212, %v190, 0
  %v329 = vsel %vm212, %v191, 0
  %v332 = vsel %vm212, %v192, 0
  %v335 = vsel %vm212, %v193, 0
  %v338 = vsel %vm212, %v194, 0
  %v341 = vsel %vm212, %v195, 0
  %343 = vmatpush.msra.mxu0 0.0
  %344 = vmatpush.msra.mxu0 0.0
  %345 = vmatpush.msra.mxu0 0.0
  %346 = vmatpush.msra.mxu0 0.0
  %347 = vmatpush.msra.mxu0 0.0
  %348 = vmatpush.msra.mxu0 0.0
  %349 = vmatpush.msra.mxu0 0.0
  %350 = vmatpush.msra.mxu0 0.0
  %351 = vmatpush.msra.mxu0 0.0
  %352 = vmatpush.msra.mxu0 0.0
  %353 = vmatpush.msra.mxu0 0.0
  %354 = vmatpush.msra.mxu0 0.0
  %355 = vmatpush.msra.mxu0 %v202
  %356 = vmatpush.msra.mxu0 %v200
  %357 = vmatpush.msra.mxu0 %v198
  %358 = vmatpush.msra.mxu0 %v196
  %359 = vmatmul.f32.gmra.mxu0 %v320
  %v360 = vpop.f32.mrf.mxu0
  %v361 = vadd.f32 %v255, %v360
  %362 = vmatmul.f32.gmra.mxu0 %v323
  %v363 = vpop.f32.mrf.mxu0
  %v364 = vadd.f32 %v258, %v363
  %365 = vmatmul.f32.gmra.mxu0 %v326
  %v366 = vpop.f32.mrf.mxu0
  %v367 = vadd.f32 %v261, %v366
  %368 = vmatmul.f32.gmra.mxu0 %v329
  %v369 = vpop.f32.mrf.mxu0
  %v370 = vadd.f32 %v264, %v369
  %371 = vmatmul.f32.gmra.mxu0 %v332
  %v372 = vpop.f32.mrf.mxu0
  %v373 = vadd.f32 %v267, %v372
  %374 = vmatmul.f32.gmra.mxu0 %v335
  %v375 = vpop.f32.mrf.mxu0
  %v376 = vadd.f32 %v270, %v375
  %377 = vmatmul.f32.gmra.mxu0 %v338
  %v378 = vpop.f32.mrf.mxu0
  %v379 = vadd.f32 %v273, %v378
  %380 = vmatmul.f32.gmra.mxu0 %v341
  %v381 = vpop.f32.mrf.mxu0
  %v382 = vadd.f32 %v276, %v381
  %383 = vdwg.mxu0
  %384 = vmatpush.msra.mxu0 0.0
  %385 = vmatpush.msra.mxu0 0.0
  %386 = vmatpush.msra.mxu0 0.0
  %387 = vmatpush.msra.mxu0 0.0
  %388 = vmatpush.msra.mxu0 0.0
  %389 = vmatpush.msra.mxu0 0.0
  %390 = vmatpush.msra.mxu0 0.0
  %391 = vmatpush.msra.mxu0 0.0
  %392 = vmatpush.msra.mxu0 0.0
  %393 = vmatpush.msra.mxu0 0.0
  %394 = vmatpush.msra.mxu0 0.0
  %395 = vmatpush.msra.mxu0 0.0
  %396 = vmatpush.msra.mxu0 %v203
  %397 = vmatpush.msra.mxu0 %v201
  %398 = vmatpush.msra.mxu0 %v199
  %399 = vmatpush.msra.mxu0 %v197
  %400 = vmatmul.f32.gmra.mxu0 %v320
  %v401 = vpop.f32.mrf.mxu0
  %v402 = vadd.f32 %v296, %v401
  %403 = vmatmul.f32.gmra.mxu0 %v323
  %v404 = vpop.f32.mrf.mxu0
  %v405 = vadd.f32 %v299, %v404
  %406 = vmatmul.f32.gmra.mxu0 %v326
  %v407 = vpop.f32.mrf.mxu0
  %v408 = vadd.f32 %v302, %v407
  %409 = vmatmul.f32.gmra.mxu0 %v329
  %v410 = vpop.f32.mrf.mxu0
  %v411 = vadd.f32 %v305, %v410
  %412 = vmatmul.f32.gmra.mxu0 %v332
  %v413 = vpop.f32.mrf.mxu0
  %v414 = vadd.f32 %v308, %v413
  %415 = vmatmul.f32.gmra.mxu0 %v335
  %v416 = vpop.f32.mrf.mxu0
  %v417 = vadd.f32 %v311, %v416
  %418 = vmatmul.f32.gmra.mxu0 %v338
  %v419 = vpop.f32.mrf.mxu0
  %v420 = vadd.f32 %v314, %v419
  %421 = vmatmul.f32.gmra.mxu0 %v341
  %v422 = vpop.f32.mrf.mxu0
  %v423 = vadd.f32 %v317, %v422
  %424 = vdwg.mxu0
  %v425 = vld [vmem:[%s5] sm:$0x3]
  %v427 = vperm.slane %v425, 0
  %v428 = vperm.slane %v425, 1
  %v431 = vadd.f32 %v361, %v427
  %v432 = vadd.f32 %v402, %v428
  %v433 = vadd.f32 %v364, %v427
  %v434 = vadd.f32 %v405, %v428
  %v435 = vadd.f32 %v367, %v427
  %v436 = vadd.f32 %v408, %v428
  %v437 = vadd.f32 %v370, %v427
  %v438 = vadd.f32 %v411, %v428
  %v439 = vadd.f32 %v373, %v427
  %v440 = vadd.f32 %v414, %v428
  %v441 = vadd.f32 %v376, %v427
  %v442 = vadd.f32 %v417, %v428
  %v443 = vadd.f32 %v379, %v427
  %v444 = vadd.f32 %v420, %v428
  %v445 = vadd.f32 %v382, %v427
  %v446 = vadd.f32 %v423, %v428
  %447 = vst [vmem:[#allocation2] sm:$0xff] %v431
  %448 = vst [vmem:[#allocation2 + $0x8] sm:$0xff] %v432
  %449 = vst [vmem:[#allocation2 + $0x10] sm:$0xff] %v433
  %450 = vst [vmem:[#allocation2 + $0x18] sm:$0xff] %v434
  %451 = vst [vmem:[#allocation2 + $0x20] sm:$0xff] %v435
  %452 = vst [vmem:[#allocation2 + $0x28] sm:$0xff] %v436
  %453 = vst [vmem:[#allocation2 + $0x30] sm:$0xff] %v437
  %454 = vst [vmem:[#allocation2 + $0x38] sm:$0xff] %v438
  %455 = vst [vmem:[#allocation2 + $0x40] sm:$0xff] %v439
  %456 = vst [vmem:[#allocation2 + $0x48] sm:$0xff] %v440
  %457 = vst [vmem:[#allocation2 + $0x50] sm:$0xff] %v441
  %458 = vst [vmem:[#allocation2 + $0x58] sm:$0xff] %v442
  %459 = vst [vmem:[#allocation2 + $0x60] sm:$0xff] %v443
  %460 = vst [vmem:[#allocation2 + $0x68] sm:$0xff] %v444
  %461 = vst [vmem:[#allocation2 + $0x70] sm:$0xff] %v445
  %462 = vst [vmem:[#allocation2 + $0x78] sm:$0xff] %v446
  %v463 = vld [vmem:[%s6] sm:$0xff]
  %v464 = vld [vmem:[%s6 + $0x8] sm:$0xff]
  %vm465 = vcmp.gt.f32.partialorder %v463, 0.5
  %vm466 = vcmp.gt.f32.partialorder %v464, 0.5
  %vm467 = vcmask 523264
  %468 = vst.msk [vmem:[#allocation3] sm:$0xff] %vm467, 0.0
  %469 = vst.msk [vmem:[#allocation4] sm:$0xff] %vm467, 0.0
  %470 = vst.msk [vmem:[#allocation5] sm:$0xff] %vm467, -1e+30
  %s471 = smul.u32 0, 2
  %s472 = smul.addr %s471, 8
  %s473 = scalar_lea.vmem [#allocation2], %s472
  %v474 = vld [vmem:[%s473] sm:$0xff]
  %v475 = vld [vmem:[%s473 + $0x8] sm:$0xff]
  %s476 = smul.u32 7, 2
  %s477 = smul.addr %s476, 8
  %s478 = scalar_lea.vmem [#allocation2], %s477
  %v479 = vld [vmem:[%s478] sm:$0xff]
  %v480 = vld [vmem:[%s478 + $0x8] sm:$0xff]
  %v481 = vsel %vm465, %v479, %v474
  %v482 = vsel %vm466, %v480, %v475
  %v483 = vld [vmem:[#allocation3] sm:$0xff]
  %v484 = vld [vmem:[%s8] sm:$0xff]
  %v485 = vld [vmem:[%s8 + $0x8] sm:$0xff]
  %v486 = vld [vmem:[%s8 + $0x10] sm:$0xff]
  %v487 = vld [vmem:[%s8 + $0x18] sm:$0xff]
  %v488 = vld [vmem:[%s8 + $0x20] sm:$0xff]
  %v489 = vld [vmem:[%s8 + $0x28] sm:$0xff]
  %v490 = vld [vmem:[%s8 + $0x30] sm:$0xff]
  %v491 = vld [vmem:[%s8 + $0x38] sm:$0xff]
  %v492 = vld [vmem:[%s8 + $0x40] sm:$0xff]
  %v493 = vld [vmem:[%s8 + $0x48] sm:$0xff]
  %v494 = vld [vmem:[%s8 + $0x50] sm:$0xff]
  %v495 = vld [vmem:[%s8 + $0x58] sm:$0xff]
  %v496 = vld [vmem:[%s8 + $0x60] sm:$0xff]
  %v497 = vld [vmem:[%s8 + $0x68] sm:$0xff]
  %v498 = vld [vmem:[%s8 + $0x70] sm:$0xff]
  %v499 = vld [vmem:[%s8 + $0x78] sm:$0xff]
  %v501 = vsel %vm467, %v483, 0
  %503 = vmatpush.msra.mxu0 0.0
  %504 = vmatpush.msra.mxu0 0.0
  %505 = vmatpush.msra.mxu0 0.0
  %506 = vmatpush.msra.mxu0 0.0
  %507 = vmatpush.msra.mxu0 0.0
  %508 = vmatpush.msra.mxu0 0.0
  %509 = vmatpush.msra.mxu0 0.0
  %510 = vmatpush.msra.mxu0 0.0
  %511 = vmatpush.msra.mxu0 %v498
  %512 = vmatpush.msra.mxu0 %v496
  %513 = vmatpush.msra.mxu0 %v494
  %514 = vmatpush.msra.mxu0 %v492
  %515 = vmatpush.msra.mxu0 %v490
  %516 = vmatpush.msra.mxu0 %v488
  %517 = vmatpush.msra.mxu0 %v486
  %518 = vmatpush.msra.mxu0 %v484
  %519 = vmatmul.f32.gmra.mxu0 %v501
  %v520 = vpop.f32.mrf.mxu0
  %v521 = vadd.f32 0.0, %v520
  %522 = vdwg.mxu0
  %523 = vmatpush.msra.mxu0 0.0
  %524 = vmatpush.msra.mxu0 0.0
  %525 = vmatpush.msra.mxu0 0.0
  %526 = vmatpush.msra.mxu0 0.0
  %527 = vmatpush.msra.mxu0 0.0
  %528 = vmatpush.msra.mxu0 0.0
  %529 = vmatpush.msra.mxu0 0.0
  %530 = vmatpush.msra.mxu0 0.0
  %531 = vmatpush.msra.mxu0 %v499
  %532 = vmatpush.msra.mxu0 %v497
  %533 = vmatpush.msra.mxu0 %v495
  %534 = vmatpush.msra.mxu0 %v493
  %535 = vmatpush.msra.mxu0 %v491
  %536 = vmatpush.msra.mxu0 %v489
  %537 = vmatpush.msra.mxu0 %v487
  %538 = vmatpush.msra.mxu0 %v485
  %539 = vmatmul.f32.gmra.mxu0 %v501
  %v540 = vpop.f32.mrf.mxu0
  %v541 = vadd.f32 0.0, %v540
  %542 = vdwg.mxu0
  %v543 = vadd.f32 %v481, %v521
  %v544 = vadd.f32 %v482, %v541
  %v545 = vmul.f32 %v543, 0.5
  %v546 = vmul.f32 %v544, 0.5
  %v547 = vtanh.pop %v545
  %v548 = vtanh.pop %v546
  %v549 = vmul.f32 %v547, 0.5
  %v550 = vmul.f32 %v548, 0.5
  %v551 = vadd.f32 %v549, 0.5
  %v552 = vadd.f32 %v550, 0.5
  %v553 = vtanh.pop %v544
  %v554 = vld [vmem:[%s7] sm:$0xff]
  %v555 = vld [vmem:[#allocation4] sm:$0xff]
  %557 = vrot.lane.b32.xlu0 %v555, 64
  %v558 = vpop.permute.xlu0 %557
  %v560 = vmul.f32 %v551, %v558
  %562 = vrot.lane.b32.xlu0 %v553, 64
  %v563 = vpop.permute.xlu0 %562
  %v565 = vmul.f32 %v551, %v563
  %567 = vrot.lane.b32.xlu0 %v565, 64
  %v568 = vpop.permute.xlu0 %567
  %v570 = vadd.f32 %v560, %v568
  %v571 = vtanh.pop %v570
  %573 = vrot.lane.b32.xlu0 %v571, 64
  %v574 = vpop.permute.xlu0 %573
  %v576 = vmul.f32 %v552, %v574
  %v577 = vmul.f32 %v576, %v554
  %579 = vrot.lane.b32.xlu0 %v554, 64
  %v580 = vpop.permute.xlu0 %579
  %v582 = vmul.f32 %v570, %v580
  %584 = vrot.lane.b32.xlu0 %v582, 64
  %v585 = vpop.permute.xlu0 %584
  %587 = vst.msk [vmem:[#allocation4] sm:$0xff] %vm467, %v585
  %588 = vst.msk [vmem:[#allocation3] sm:$0xff] %vm467, %v577
  %v589 = vld [vmem:[#allocation5] sm:$0xff]
  %v590 = vsub.f32 %v554, 1.0
  %v591 = vmul.f32 %v590, 1000000.0
  %v592 = vadd.f32 %v577, %v591
  %v593 = vmax.f32 %v589, %v592
  %594 = vst.msk [vmem:[#allocation5] sm:$0xff] %vm467, %v593
  %s595 = smul.u32 1, 2
  %s596 = smul.addr %s595, 8
  %s597 = scalar_lea.vmem [#allocation2], %s596
  %v598 = vld [vmem:[%s597] sm:$0xff]
  %v599 = vld [vmem:[%s597 + $0x8] sm:$0xff]
  %s600 = smul.u32 6, 2
  %s601 = smul.addr %s600, 8
  %s602 = scalar_lea.vmem [#allocation2], %s601
  %v603 = vld [vmem:[%s602] sm:$0xff]
  %v604 = vld [vmem:[%s602 + $0x8] sm:$0xff]
  %v605 = vsel %vm465, %v603, %v598
  %v606 = vsel %vm466, %v604, %v599
  %v607 = vld [vmem:[#allocation3] sm:$0xff]
  %v608 = vld [vmem:[%s8] sm:$0xff]
  %v609 = vld [vmem:[%s8 + $0x8] sm:$0xff]
  %v610 = vld [vmem:[%s8 + $0x10] sm:$0xff]
  %v611 = vld [vmem:[%s8 + $0x18] sm:$0xff]
  %v612 = vld [vmem:[%s8 + $0x20] sm:$0xff]
  %v613 = vld [vmem:[%s8 + $0x28] sm:$0xff]
  %v614 = vld [vmem:[%s8 + $0x30] sm:$0xff]
  %v615 = vld [vmem:[%s8 + $0x38] sm:$0xff]
  %v616 = vld [vmem:[%s8 + $0x40] sm:$0xff]
  %v617 = vld [vmem:[%s8 + $0x48] sm:$0xff]
  %v618 = vld [vmem:[%s8 + $0x50] sm:$0xff]
  %v619 = vld [vmem:[%s8 + $0x58] sm:$0xff]
  %v620 = vld [vmem:[%s8 + $0x60] sm:$0xff]
  %v621 = vld [vmem:[%s8 + $0x68] sm:$0xff]
  %v622 = vld [vmem:[%s8 + $0x70] sm:$0xff]
  %v623 = vld [vmem:[%s8 + $0x78] sm:$0xff]
  %v625 = vsel %vm467, %v607, 0
  %627 = vmatpush.msra.mxu0 0.0
  %628 = vmatpush.msra.mxu0 0.0
  %629 = vmatpush.msra.mxu0 0.0
  %630 = vmatpush.msra.mxu0 0.0
  %631 = vmatpush.msra.mxu0 0.0
  %632 = vmatpush.msra.mxu0 0.0
  %633 = vmatpush.msra.mxu0 0.0
  %634 = vmatpush.msra.mxu0 0.0
  %635 = vmatpush.msra.mxu0 %v622
  %636 = vmatpush.msra.mxu0 %v620
  %637 = vmatpush.msra.mxu0 %v618
  %638 = vmatpush.msra.mxu0 %v616
  %639 = vmatpush.msra.mxu0 %v614
  %640 = vmatpush.msra.mxu0 %v612
  %641 = vmatpush.msra.mxu0 %v610
  %642 = vmatpush.msra.mxu0 %v608
  %643 = vmatmul.f32.gmra.mxu0 %v625
  %v644 = vpop.f32.mrf.mxu0
  %v645 = vadd.f32 0.0, %v644
  %646 = vdwg.mxu0
  %647 = vmatpush.msra.mxu0 0.0
  %648 = vmatpush.msra.mxu0 0.0
  %649 = vmatpush.msra.mxu0 0.0
  %650 = vmatpush.msra.mxu0 0.0
  %651 = vmatpush.msra.mxu0 0.0
  %652 = vmatpush.msra.mxu0 0.0
  %653 = vmatpush.msra.mxu0 0.0
  %654 = vmatpush.msra.mxu0 0.0
  %655 = vmatpush.msra.mxu0 %v623
  %656 = vmatpush.msra.mxu0 %v621
  %657 = vmatpush.msra.mxu0 %v619
  %658 = vmatpush.msra.mxu0 %v617
  %659 = vmatpush.msra.mxu0 %v615
  %660 = vmatpush.msra.mxu0 %v613
  %661 = vmatpush.msra.mxu0 %v611
  %662 = vmatpush.msra.mxu0 %v609
  %663 = vmatmul.f32.gmra.mxu0 %v625
  %v664 = vpop.f32.mrf.mxu0
  %v665 = vadd.f32 0.0, %v664
  %666 = vdwg.mxu0
  %v667 = vadd.f32 %v605, %v645
  %v668 = vadd.f32 %v606, %v665
  %v669 = vmul.f32 %v667, 0.5
  %v670 = vmul.f32 %v668, 0.5
  %v671 = vtanh.pop %v669
  %v672 = vtanh.pop %v670
  %v673 = vmul.f32 %v671, 0.5
  %v674 = vmul.f32 %v672, 0.5
  %v675 = vadd.f32 %v673, 0.5
  %v676 = vadd.f32 %v674, 0.5
  %v677 = vtanh.pop %v668
  %s678 = scalar_lea.vmem %s7, 8
  %v679 = vld [vmem:[%s678] sm:$0xff]
  %v680 = vld [vmem:[#allocation4] sm:$0xff]
  %682 = vrot.lane.b32.xlu0 %v680, 64
  %v683 = vpop.permute.xlu0 %682
  %v685 = vmul.f32 %v675, %v683
  %687 = vrot.lane.b32.xlu0 %v677, 64
  %v688 = vpop.permute.xlu0 %687
  %v690 = vmul.f32 %v675, %v688
  %692 = vrot.lane.b32.xlu0 %v690, 64
  %v693 = vpop.permute.xlu0 %692
  %v695 = vadd.f32 %v685, %v693
  %v696 = vtanh.pop %v695
  %698 = vrot.lane.b32.xlu0 %v696, 64
  %v699 = vpop.permute.xlu0 %698
  %v701 = vmul.f32 %v676, %v699
  %v702 = vmul.f32 %v701, %v679
  %704 = vrot.lane.b32.xlu0 %v679, 64
  %v705 = vpop.permute.xlu0 %704
  %v707 = vmul.f32 %v695, %v705
  %709 = vrot.lane.b32.xlu0 %v707, 64
  %v710 = vpop.permute.xlu0 %709
  %712 = vst.msk [vmem:[#allocation4] sm:$0xff] %vm467, %v710
  %713 = vst.msk [vmem:[#allocation3] sm:$0xff] %vm467, %v702
  %v714 = vld [vmem:[#allocation5] sm:$0xff]
  %v715 = vsub.f32 %v679, 1.0
  %v716 = vmul.f32 %v715, 1000000.0
  %v717 = vadd.f32 %v702, %v716
  %v718 = vmax.f32 %v714, %v717
  %719 = vst.msk [vmem:[#allocation5] sm:$0xff] %vm467, %v718
  %s720 = smul.u32 2, 2
  %s721 = smul.addr %s720, 8
  %s722 = scalar_lea.vmem [#allocation2], %s721
  %v723 = vld [vmem:[%s722] sm:$0xff]
  %v724 = vld [vmem:[%s722 + $0x8] sm:$0xff]
  %s725 = smul.u32 5, 2
  %s726 = smul.addr %s725, 8
  %s727 = scalar_lea.vmem [#allocation2], %s726
  %v728 = vld [vmem:[%s727] sm:$0xff]
  %v729 = vld [vmem:[%s727 + $0x8] sm:$0xff]
  %v730 = vsel %vm465, %v728, %v723
  %v731 = vsel %vm466, %v729, %v724
  %v732 = vld [vmem:[#allocation3] sm:$0xff]
  %v733 = vld [vmem:[%s8] sm:$0xff]
  %v734 = vld [vmem:[%s8 + $0x8] sm:$0xff]
  %v735 = vld [vmem:[%s8 + $0x10] sm:$0xff]
  %v736 = vld [vmem:[%s8 + $0x18] sm:$0xff]
  %v737 = vld [vmem:[%s8 + $0x20] sm:$0xff]
  %v738 = vld [vmem:[%s8 + $0x28] sm:$0xff]
  %v739 = vld [vmem:[%s8 + $0x30] sm:$0xff]
  %v740 = vld [vmem:[%s8 + $0x38] sm:$0xff]
  %v741 = vld [vmem:[%s8 + $0x40] sm:$0xff]
  %v742 = vld [vmem:[%s8 + $0x48] sm:$0xff]
  %v743 = vld [vmem:[%s8 + $0x50] sm:$0xff]
  %v744 = vld [vmem:[%s8 + $0x58] sm:$0xff]
  %v745 = vld [vmem:[%s8 + $0x60] sm:$0xff]
  %v746 = vld [vmem:[%s8 + $0x68] sm:$0xff]
  %v747 = vld [vmem:[%s8 + $0x70] sm:$0xff]
  %v748 = vld [vmem:[%s8 + $0x78] sm:$0xff]
  %v750 = vsel %vm467, %v732, 0
  %752 = vmatpush.msra.mxu0 0.0
  %753 = vmatpush.msra.mxu0 0.0
  %754 = vmatpush.msra.mxu0 0.0
  %755 = vmatpush.msra.mxu0 0.0
  %756 = vmatpush.msra.mxu0 0.0
  %757 = vmatpush.msra.mxu0 0.0
  %758 = vmatpush.msra.mxu0 0.0
  %759 = vmatpush.msra.mxu0 0.0
  %760 = vmatpush.msra.mxu0 %v747
  %761 = vmatpush.msra.mxu0 %v745
  %762 = vmatpush.msra.mxu0 %v743
  %763 = vmatpush.msra.mxu0 %v741
  %764 = vmatpush.msra.mxu0 %v739
  %765 = vmatpush.msra.mxu0 %v737
  %766 = vmatpush.msra.mxu0 %v735
  %767 = vmatpush.msra.mxu0 %v733
  %768 = vmatmul.f32.gmra.mxu0 %v750
  %v769 = vpop.f32.mrf.mxu0
  %v770 = vadd.f32 0.0, %v769
  %771 = vdwg.mxu0
  %772 = vmatpush.msra.mxu0 0.0
  %773 = vmatpush.msra.mxu0 0.0
  %774 = vmatpush.msra.mxu0 0.0
  %775 = vmatpush.msra.mxu0 0.0
  %776 = vmatpush.msra.mxu0 0.0
  %777 = vmatpush.msra.mxu0 0.0
  %778 = vmatpush.msra.mxu0 0.0
  %779 = vmatpush.msra.mxu0 0.0
  %780 = vmatpush.msra.mxu0 %v748
  %781 = vmatpush.msra.mxu0 %v746
  %782 = vmatpush.msra.mxu0 %v744
  %783 = vmatpush.msra.mxu0 %v742
  %784 = vmatpush.msra.mxu0 %v740
  %785 = vmatpush.msra.mxu0 %v738
  %786 = vmatpush.msra.mxu0 %v736
  %787 = vmatpush.msra.mxu0 %v734
  %788 = vmatmul.f32.gmra.mxu0 %v750
  %v789 = vpop.f32.mrf.mxu0
  %v790 = vadd.f32 0.0, %v789
  %791 = vdwg.mxu0
  %v792 = vadd.f32 %v730, %v770
  %v793 = vadd.f32 %v731, %v790
  %v794 = vmul.f32 %v792, 0.5
  %v795 = vmul.f32 %v793, 0.5
  %v796 = vtanh.pop %v794
  %v797 = vtanh.pop %v795
  %v798 = vmul.f32 %v796, 0.5
  %v799 = vmul.f32 %v797, 0.5
  %v800 = vadd.f32 %v798, 0.5
  %v801 = vadd.f32 %v799, 0.5
  %v802 = vtanh.pop %v793
  %s803 = scalar_lea.vmem %s7, 16
  %v804 = vld [vmem:[%s803] sm:$0xff]
  %v805 = vld [vmem:[#allocation4] sm:$0xff]
  %807 = vrot.lane.b32.xlu0 %v805, 64
  %v808 = vpop.permute.xlu0 %807
  %v810 = vmul.f32 %v800, %v808
  %812 = vrot.lane.b32.xlu0 %v802, 64
  %v813 = vpop.permute.xlu0 %812
  %v815 = vmul.f32 %v800, %v813
  %817 = vrot.lane.b32.xlu0 %v815, 64
  %v818 = vpop.permute.xlu0 %817
  %v820 = vadd.f32 %v810, %v818
  %v821 = vtanh.pop %v820
  %823 = vrot.lane.b32.xlu0 %v821, 64
  %v824 = vpop.permute.xlu0 %823
  %v826 = vmul.f32 %v801, %v824
  %v827 = vmul.f32 %v826, %v804
  %829 = vrot.lane.b32.xlu0 %v804, 64
  %v830 = vpop.permute.xlu0 %829
  %v832 = vmul.f32 %v820, %v830
  %834 = vrot.lane.b32.xlu0 %v832, 64
  %v835 = vpop.permute.xlu0 %834
  %837 = vst.msk [vmem:[#allocation4] sm:$0xff] %vm467, %v835
  %838 = vst.msk [vmem:[#allocation3] sm:$0xff] %vm467, %v827
  %v839 = vld [vmem:[#allocation5] sm:$0xff]
  %v840 = vsub.f32 %v804, 1.0
  %v841 = vmul.f32 %v840, 1000000.0
  %v842 = vadd.f32 %v827, %v841
  %v843 = vmax.f32 %v839, %v842
  %844 = vst.msk [vmem:[#allocation5] sm:$0xff] %vm467, %v843
  %s845 = smul.u32 3, 2
  %s846 = smul.addr %s845, 8
  %s847 = scalar_lea.vmem [#allocation2], %s846
  %v848 = vld [vmem:[%s847] sm:$0xff]
  %v849 = vld [vmem:[%s847 + $0x8] sm:$0xff]
  %s850 = smul.u32 4, 2
  %s851 = smul.addr %s850, 8
  %s852 = scalar_lea.vmem [#allocation2], %s851
  %v853 = vld [vmem:[%s852] sm:$0xff]
  %v854 = vld [vmem:[%s852 + $0x8] sm:$0xff]
  %v855 = vsel %vm465, %v853, %v848
  %v856 = vsel %vm466, %v854, %v849
  %v857 = vld [vmem:[#allocation3] sm:$0xff]
  %v858 = vld [vmem:[%s8] sm:$0xff]
  %v859 = vld [vmem:[%s8 + $0x8] sm:$0xff]
  %v860 = vld [vmem:[%s8 + $0x10] sm:$0xff]
  %v861 = vld [vmem:[%s8 + $0x18] sm:$0xff]
  %v862 = vld [vmem:[%s8 + $0x20] sm:$0xff]
  %v863 = vld [vmem:[%s8 + $0x28] sm:$0xff]
  %v864 = vld [vmem:[%s8 + $0x30] sm:$0xff]
  %v865 = vld [vmem:[%s8 + $0x38] sm:$0xff]
  %v866 = vld [vmem:[%s8 + $0x40] sm:$0xff]
  %v867 = vld [vmem:[%s8 + $0x48] sm:$0xff]
  %v868 = vld [vmem:[%s8 + $0x50] sm:$0xff]
  %v869 = vld [vmem:[%s8 + $0x58] sm:$0xff]
  %v870 = vld [vmem:[%s8 + $0x60] sm:$0xff]
  %v871 = vld [vmem:[%s8 + $0x68] sm:$0xff]
  %v872 = vld [vmem:[%s8 + $0x70] sm:$0xff]
  %v873 = vld [vmem:[%s8 + $0x78] sm:$0xff]
  %v875 = vsel %vm467, %v857, 0
  %877 = vmatpush.msra.mxu0 0.0
  %878 = vmatpush.msra.mxu0 0.0
  %879 = vmatpush.msra.mxu0 0.0
  %880 = vmatpush.msra.mxu0 0.0
  %881 = vmatpush.msra.mxu0 0.0
  %882 = vmatpush.msra.mxu0 0.0
  %883 = vmatpush.msra.mxu0 0.0
  %884 = vmatpush.msra.mxu0 0.0
  %885 = vmatpush.msra.mxu0 %v872
  %886 = vmatpush.msra.mxu0 %v870
  %887 = vmatpush.msra.mxu0 %v868
  %888 = vmatpush.msra.mxu0 %v866
  %889 = vmatpush.msra.mxu0 %v864
  %890 = vmatpush.msra.mxu0 %v862
  %891 = vmatpush.msra.mxu0 %v860
  %892 = vmatpush.msra.mxu0 %v858
  %893 = vmatmul.f32.gmra.mxu0 %v875
  %v894 = vpop.f32.mrf.mxu0
  %v895 = vadd.f32 0.0, %v894
  %896 = vdwg.mxu0
  %897 = vmatpush.msra.mxu0 0.0
  %898 = vmatpush.msra.mxu0 0.0
  %899 = vmatpush.msra.mxu0 0.0
  %900 = vmatpush.msra.mxu0 0.0
  %901 = vmatpush.msra.mxu0 0.0
  %902 = vmatpush.msra.mxu0 0.0
  %903 = vmatpush.msra.mxu0 0.0
  %904 = vmatpush.msra.mxu0 0.0
  %905 = vmatpush.msra.mxu0 %v873
  %906 = vmatpush.msra.mxu0 %v871
  %907 = vmatpush.msra.mxu0 %v869
  %908 = vmatpush.msra.mxu0 %v867
  %909 = vmatpush.msra.mxu0 %v865
  %910 = vmatpush.msra.mxu0 %v863
  %911 = vmatpush.msra.mxu0 %v861
  %912 = vmatpush.msra.mxu0 %v859
  %913 = vmatmul.f32.gmra.mxu0 %v875
  %v914 = vpop.f32.mrf.mxu0
  %v915 = vadd.f32 0.0, %v914
  %916 = vdwg.mxu0
  %v917 = vadd.f32 %v855, %v895
  %v918 = vadd.f32 %v856, %v915
  %v919 = vmul.f32 %v917, 0.5
  %v920 = vmul.f32 %v918, 0.5
  %v921 = vtanh.pop %v919
  %v922 = vtanh.pop %v920
  %v923 = vmul.f32 %v921, 0.5
  %v924 = vmul.f32 %v922, 0.5
  %v925 = vadd.f32 %v923, 0.5
  %v926 = vadd.f32 %v924, 0.5
  %v927 = vtanh.pop %v918
  %s928 = scalar_lea.vmem %s7, 24
  %v929 = vld [vmem:[%s928] sm:$0xff]
  %v930 = vld [vmem:[#allocation4] sm:$0xff]
  %932 = vrot.lane.b32.xlu0 %v930, 64
  %v933 = vpop.permute.xlu0 %932
  %v935 = vmul.f32 %v925, %v933
  %937 = vrot.lane.b32.xlu0 %v927, 64
  %v938 = vpop.permute.xlu0 %937
  %v940 = vmul.f32 %v925, %v938
  %942 = vrot.lane.b32.xlu0 %v940, 64
  %v943 = vpop.permute.xlu0 %942
  %v945 = vadd.f32 %v935, %v943
  %v946 = vtanh.pop %v945
  %948 = vrot.lane.b32.xlu0 %v946, 64
  %v949 = vpop.permute.xlu0 %948
  %v951 = vmul.f32 %v926, %v949
  %v952 = vmul.f32 %v951, %v929
  %954 = vrot.lane.b32.xlu0 %v929, 64
  %v955 = vpop.permute.xlu0 %954
  %v957 = vmul.f32 %v945, %v955
  %959 = vrot.lane.b32.xlu0 %v957, 64
  %v960 = vpop.permute.xlu0 %959
  %962 = vst.msk [vmem:[#allocation4] sm:$0xff] %vm467, %v960
  %963 = vst.msk [vmem:[#allocation3] sm:$0xff] %vm467, %v952
  %v964 = vld [vmem:[#allocation5] sm:$0xff]
  %v965 = vsub.f32 %v929, 1.0
  %v966 = vmul.f32 %v965, 1000000.0
  %v967 = vadd.f32 %v952, %v966
  %v968 = vmax.f32 %v964, %v967
  %969 = vst.msk [vmem:[#allocation5] sm:$0xff] %vm467, %v968
  %v970 = vld [vmem:[%s852] sm:$0xff]
  %v971 = vld [vmem:[%s852 + $0x8] sm:$0xff]
  %v972 = vld [vmem:[%s847] sm:$0xff]
  %v973 = vld [vmem:[%s847 + $0x8] sm:$0xff]
  %v974 = vsel %vm465, %v972, %v970
  %v975 = vsel %vm466, %v973, %v971
  %v976 = vld [vmem:[#allocation3] sm:$0xff]
  %v977 = vld [vmem:[%s8] sm:$0xff]
  %v978 = vld [vmem:[%s8 + $0x8] sm:$0xff]
  %v979 = vld [vmem:[%s8 + $0x10] sm:$0xff]
  %v980 = vld [vmem:[%s8 + $0x18] sm:$0xff]
  %v981 = vld [vmem:[%s8 + $0x20] sm:$0xff]
  %v982 = vld [vmem:[%s8 + $0x28] sm:$0xff]
  %v983 = vld [vmem:[%s8 + $0x30] sm:$0xff]
  %v984 = vld [vmem:[%s8 + $0x38] sm:$0xff]
  %v985 = vld [vmem:[%s8 + $0x40] sm:$0xff]
  %v986 = vld [vmem:[%s8 + $0x48] sm:$0xff]
  %v987 = vld [vmem:[%s8 + $0x50] sm:$0xff]
  %v988 = vld [vmem:[%s8 + $0x58] sm:$0xff]
  %v989 = vld [vmem:[%s8 + $0x60] sm:$0xff]
  %v990 = vld [vmem:[%s8 + $0x68] sm:$0xff]
  %v991 = vld [vmem:[%s8 + $0x70] sm:$0xff]
  %v992 = vld [vmem:[%s8 + $0x78] sm:$0xff]
  %v994 = vsel %vm467, %v976, 0
  %996 = vmatpush.msra.mxu0 0.0
  %997 = vmatpush.msra.mxu0 0.0
  %998 = vmatpush.msra.mxu0 0.0
  %999 = vmatpush.msra.mxu0 0.0
  %1000 = vmatpush.msra.mxu0 0.0
  %1001 = vmatpush.msra.mxu0 0.0
  %1002 = vmatpush.msra.mxu0 0.0
  %1003 = vmatpush.msra.mxu0 0.0
  %1004 = vmatpush.msra.mxu0 %v991
  %1005 = vmatpush.msra.mxu0 %v989
  %1006 = vmatpush.msra.mxu0 %v987
  %1007 = vmatpush.msra.mxu0 %v985
  %1008 = vmatpush.msra.mxu0 %v983
  %1009 = vmatpush.msra.mxu0 %v981
  %1010 = vmatpush.msra.mxu0 %v979
  %1011 = vmatpush.msra.mxu0 %v977
  %1012 = vmatmul.f32.gmra.mxu0 %v994
  %v1013 = vpop.f32.mrf.mxu0
  %v1014 = vadd.f32 0.0, %v1013
  %1015 = vdwg.mxu0
  %1016 = vmatpush.msra.mxu0 0.0
  %1017 = vmatpush.msra.mxu0 0.0
  %1018 = vmatpush.msra.mxu0 0.0
  %1019 = vmatpush.msra.mxu0 0.0
  %1020 = vmatpush.msra.mxu0 0.0
  %1021 = vmatpush.msra.mxu0 0.0
  %1022 = vmatpush.msra.mxu0 0.0
  %1023 = vmatpush.msra.mxu0 0.0
  %1024 = vmatpush.msra.mxu0 %v992
  %1025 = vmatpush.msra.mxu0 %v990
  %1026 = vmatpush.msra.mxu0 %v988
  %1027 = vmatpush.msra.mxu0 %v986
  %1028 = vmatpush.msra.mxu0 %v984
  %1029 = vmatpush.msra.mxu0 %v982
  %1030 = vmatpush.msra.mxu0 %v980
  %1031 = vmatpush.msra.mxu0 %v978
  %1032 = vmatmul.f32.gmra.mxu0 %v994
  %v1033 = vpop.f32.mrf.mxu0
  %v1034 = vadd.f32 0.0, %v1033
  %1035 = vdwg.mxu0
  %v1036 = vadd.f32 %v974, %v1014
  %v1037 = vadd.f32 %v975, %v1034
  %v1038 = vmul.f32 %v1036, 0.5
  %v1039 = vmul.f32 %v1037, 0.5
  %v1040 = vtanh.pop %v1038
  %v1041 = vtanh.pop %v1039
  %v1042 = vmul.f32 %v1040, 0.5
  %v1043 = vmul.f32 %v1041, 0.5
  %v1044 = vadd.f32 %v1042, 0.5
  %v1045 = vadd.f32 %v1043, 0.5
  %v1046 = vtanh.pop %v1037
  %s1047 = scalar_lea.vmem %s7, 32
  %v1048 = vld [vmem:[%s1047] sm:$0xff]
  %v1049 = vld [vmem:[#allocation4] sm:$0xff]
  %1051 = vrot.lane.b32.xlu0 %v1049, 64
  %v1052 = vpop.permute.xlu0 %1051
  %v1054 = vmul.f32 %v1044, %v1052
  %1056 = vrot.lane.b32.xlu0 %v1046, 64
  %v1057 = vpop.permute.xlu0 %1056
  %v1059 = vmul.f32 %v1044, %v1057
  %1061 = vrot.lane.b32.xlu0 %v1059, 64
  %v1062 = vpop.permute.xlu0 %1061
  %v1064 = vadd.f32 %v1054, %v1062
  %v1065 = vtanh.pop %v1064
  %1067 = vrot.lane.b32.xlu0 %v1065, 64
  %v1068 = vpop.permute.xlu0 %1067
  %v1070 = vmul.f32 %v1045, %v1068
  %v1071 = vmul.f32 %v1070, %v1048
  %1073 = vrot.lane.b32.xlu0 %v1048, 64
  %v1074 = vpop.permute.xlu0 %1073
  %v1076 = vmul.f32 %v1064, %v1074
  %1078 = vrot.lane.b32.xlu0 %v1076, 64
  %v1079 = vpop.permute.xlu0 %1078
  %1081 = vst.msk [vmem:[#allocation4] sm:$0xff] %vm467, %v1079
  %1082 = vst.msk [vmem:[#allocation3] sm:$0xff] %vm467, %v1071
  %v1083 = vld [vmem:[#allocation5] sm:$0xff]
  %v1084 = vsub.f32 %v1048, 1.0
  %v1085 = vmul.f32 %v1084, 1000000.0
  %v1086 = vadd.f32 %v1071, %v1085
  %v1087 = vmax.f32 %v1083, %v1086
  %1088 = vst.msk [vmem:[#allocation5] sm:$0xff] %vm467, %v1087
  %v1089 = vld [vmem:[%s727] sm:$0xff]
  %v1090 = vld [vmem:[%s727 + $0x8] sm:$0xff]
  %v1091 = vld [vmem:[%s722] sm:$0xff]
  %v1092 = vld [vmem:[%s722 + $0x8] sm:$0xff]
  %v1093 = vsel %vm465, %v1091, %v1089
  %v1094 = vsel %vm466, %v1092, %v1090
  %v1095 = vld [vmem:[#allocation3] sm:$0xff]
  %v1096 = vld [vmem:[%s8] sm:$0xff]
  %v1097 = vld [vmem:[%s8 + $0x8] sm:$0xff]
  %v1098 = vld [vmem:[%s8 + $0x10] sm:$0xff]
  %v1099 = vld [vmem:[%s8 + $0x18] sm:$0xff]
  %v1100 = vld [vmem:[%s8 + $0x20] sm:$0xff]
  %v1101 = vld [vmem:[%s8 + $0x28] sm:$0xff]
  %v1102 = vld [vmem:[%s8 + $0x30] sm:$0xff]
  %v1103 = vld [vmem:[%s8 + $0x38] sm:$0xff]
  %v1104 = vld [vmem:[%s8 + $0x40] sm:$0xff]
  %v1105 = vld [vmem:[%s8 + $0x48] sm:$0xff]
  %v1106 = vld [vmem:[%s8 + $0x50] sm:$0xff]
  %v1107 = vld [vmem:[%s8 + $0x58] sm:$0xff]
  %v1108 = vld [vmem:[%s8 + $0x60] sm:$0xff]
  %v1109 = vld [vmem:[%s8 + $0x68] sm:$0xff]
  %v1110 = vld [vmem:[%s8 + $0x70] sm:$0xff]
  %v1111 = vld [vmem:[%s8 + $0x78] sm:$0xff]
  %v1113 = vsel %vm467, %v1095, 0
  %1115 = vmatpush.msra.mxu0 0.0
  %1116 = vmatpush.msra.mxu0 0.0
  %1117 = vmatpush.msra.mxu0 0.0
  %1118 = vmatpush.msra.mxu0 0.0
  %1119 = vmatpush.msra.mxu0 0.0
  %1120 = vmatpush.msra.mxu0 0.0
  %1121 = vmatpush.msra.mxu0 0.0
  %1122 = vmatpush.msra.mxu0 0.0
  %1123 = vmatpush.msra.mxu0 %v1110
  %1124 = vmatpush.msra.mxu0 %v1108
  %1125 = vmatpush.msra.mxu0 %v1106
  %1126 = vmatpush.msra.mxu0 %v1104
  %1127 = vmatpush.msra.mxu0 %v1102
  %1128 = vmatpush.msra.mxu0 %v1100
  %1129 = vmatpush.msra.mxu0 %v1098
  %1130 = vmatpush.msra.mxu0 %v1096
  %1131 = vmatmul.f32.gmra.mxu0 %v1113
  %v1132 = vpop.f32.mrf.mxu0
  %v1133 = vadd.f32 0.0, %v1132
  %1134 = vdwg.mxu0
  %1135 = vmatpush.msra.mxu0 0.0
  %1136 = vmatpush.msra.mxu0 0.0
  %1137 = vmatpush.msra.mxu0 0.0
  %1138 = vmatpush.msra.mxu0 0.0
  %1139 = vmatpush.msra.mxu0 0.0
  %1140 = vmatpush.msra.mxu0 0.0
  %1141 = vmatpush.msra.mxu0 0.0
  %1142 = vmatpush.msra.mxu0 0.0
  %1143 = vmatpush.msra.mxu0 %v1111
  %1144 = vmatpush.msra.mxu0 %v1109
  %1145 = vmatpush.msra.mxu0 %v1107
  %1146 = vmatpush.msra.mxu0 %v1105
  %1147 = vmatpush.msra.mxu0 %v1103
  %1148 = vmatpush.msra.mxu0 %v1101
  %1149 = vmatpush.msra.mxu0 %v1099
  %1150 = vmatpush.msra.mxu0 %v1097
  %1151 = vmatmul.f32.gmra.mxu0 %v1113
  %v1152 = vpop.f32.mrf.mxu0
  %v1153 = vadd.f32 0.0, %v1152
  %1154 = vdwg.mxu0
  %v1155 = vadd.f32 %v1093, %v1133
  %v1156 = vadd.f32 %v1094, %v1153
  %v1157 = vmul.f32 %v1155, 0.5
  %v1158 = vmul.f32 %v1156, 0.5
  %v1159 = vtanh.pop %v1157
  %v1160 = vtanh.pop %v1158
  %v1161 = vmul.f32 %v1159, 0.5
  %v1162 = vmul.f32 %v1160, 0.5
  %v1163 = vadd.f32 %v1161, 0.5
  %v1164 = vadd.f32 %v1162, 0.5
  %v1165 = vtanh.pop %v1156
  %s1166 = scalar_lea.vmem %s7, 40
  %v1167 = vld [vmem:[%s1166] sm:$0xff]
  %v1168 = vld [vmem:[#allocation4] sm:$0xff]
  %1170 = vrot.lane.b32.xlu0 %v1168, 64
  %v1171 = vpop.permute.xlu0 %1170
  %v1173 = vmul.f32 %v1163, %v1171
  %1175 = vrot.lane.b32.xlu0 %v1165, 64
  %v1176 = vpop.permute.xlu0 %1175
  %v1178 = vmul.f32 %v1163, %v1176
  %1180 = vrot.lane.b32.xlu0 %v1178, 64
  %v1181 = vpop.permute.xlu0 %1180
  %v1183 = vadd.f32 %v1173, %v1181
  %v1184 = vtanh.pop %v1183
  %1186 = vrot.lane.b32.xlu0 %v1184, 64
  %v1187 = vpop.permute.xlu0 %1186
  %v1189 = vmul.f32 %v1164, %v1187
  %v1190 = vmul.f32 %v1189, %v1167
  %1192 = vrot.lane.b32.xlu0 %v1167, 64
  %v1193 = vpop.permute.xlu0 %1192
  %v1195 = vmul.f32 %v1183, %v1193
  %1197 = vrot.lane.b32.xlu0 %v1195, 64
  %v1198 = vpop.permute.xlu0 %1197
  %1200 = vst.msk [vmem:[#allocation4] sm:$0xff] %vm467, %v1198
  %1201 = vst.msk [vmem:[#allocation3] sm:$0xff] %vm467, %v1190
  %v1202 = vld [vmem:[#allocation5] sm:$0xff]
  %v1203 = vsub.f32 %v1167, 1.0
  %v1204 = vmul.f32 %v1203, 1000000.0
  %v1205 = vadd.f32 %v1190, %v1204
  %v1206 = vmax.f32 %v1202, %v1205
  %1207 = vst.msk [vmem:[#allocation5] sm:$0xff] %vm467, %v1206
  %v1208 = vld [vmem:[%s602] sm:$0xff]
  %v1209 = vld [vmem:[%s602 + $0x8] sm:$0xff]
  %v1210 = vld [vmem:[%s597] sm:$0xff]
  %v1211 = vld [vmem:[%s597 + $0x8] sm:$0xff]
  %v1212 = vsel %vm465, %v1210, %v1208
  %v1213 = vsel %vm466, %v1211, %v1209
  %v1214 = vld [vmem:[#allocation3] sm:$0xff]
  %v1215 = vld [vmem:[%s8] sm:$0xff]
  %v1216 = vld [vmem:[%s8 + $0x8] sm:$0xff]
  %v1217 = vld [vmem:[%s8 + $0x10] sm:$0xff]
  %v1218 = vld [vmem:[%s8 + $0x18] sm:$0xff]
  %v1219 = vld [vmem:[%s8 + $0x20] sm:$0xff]
  %v1220 = vld [vmem:[%s8 + $0x28] sm:$0xff]
  %v1221 = vld [vmem:[%s8 + $0x30] sm:$0xff]
  %v1222 = vld [vmem:[%s8 + $0x38] sm:$0xff]
  %v1223 = vld [vmem:[%s8 + $0x40] sm:$0xff]
  %v1224 = vld [vmem:[%s8 + $0x48] sm:$0xff]
  %v1225 = vld [vmem:[%s8 + $0x50] sm:$0xff]
  %v1226 = vld [vmem:[%s8 + $0x58] sm:$0xff]
  %v1227 = vld [vmem:[%s8 + $0x60] sm:$0xff]
  %v1228 = vld [vmem:[%s8 + $0x68] sm:$0xff]
  %v1229 = vld [vmem:[%s8 + $0x70] sm:$0xff]
  %v1230 = vld [vmem:[%s8 + $0x78] sm:$0xff]
  %v1232 = vsel %vm467, %v1214, 0
  %1234 = vmatpush.msra.mxu0 0.0
  %1235 = vmatpush.msra.mxu0 0.0
  %1236 = vmatpush.msra.mxu0 0.0
  %1237 = vmatpush.msra.mxu0 0.0
  %1238 = vmatpush.msra.mxu0 0.0
  %1239 = vmatpush.msra.mxu0 0.0
  %1240 = vmatpush.msra.mxu0 0.0
  %1241 = vmatpush.msra.mxu0 0.0
  %1242 = vmatpush.msra.mxu0 %v1229
  %1243 = vmatpush.msra.mxu0 %v1227
  %1244 = vmatpush.msra.mxu0 %v1225
  %1245 = vmatpush.msra.mxu0 %v1223
  %1246 = vmatpush.msra.mxu0 %v1221
  %1247 = vmatpush.msra.mxu0 %v1219
  %1248 = vmatpush.msra.mxu0 %v1217
  %1249 = vmatpush.msra.mxu0 %v1215
  %1250 = vmatmul.f32.gmra.mxu0 %v1232
  %v1251 = vpop.f32.mrf.mxu0
  %v1252 = vadd.f32 0.0, %v1251
  %1253 = vdwg.mxu0
  %1254 = vmatpush.msra.mxu0 0.0
  %1255 = vmatpush.msra.mxu0 0.0
  %1256 = vmatpush.msra.mxu0 0.0
  %1257 = vmatpush.msra.mxu0 0.0
  %1258 = vmatpush.msra.mxu0 0.0
  %1259 = vmatpush.msra.mxu0 0.0
  %1260 = vmatpush.msra.mxu0 0.0
  %1261 = vmatpush.msra.mxu0 0.0
  %1262 = vmatpush.msra.mxu0 %v1230
  %1263 = vmatpush.msra.mxu0 %v1228
  %1264 = vmatpush.msra.mxu0 %v1226
  %1265 = vmatpush.msra.mxu0 %v1224
  %1266 = vmatpush.msra.mxu0 %v1222
  %1267 = vmatpush.msra.mxu0 %v1220
  %1268 = vmatpush.msra.mxu0 %v1218
  %1269 = vmatpush.msra.mxu0 %v1216
  %1270 = vmatmul.f32.gmra.mxu0 %v1232
  %v1271 = vpop.f32.mrf.mxu0
  %v1272 = vadd.f32 0.0, %v1271
  %1273 = vdwg.mxu0
  %v1274 = vadd.f32 %v1212, %v1252
  %v1275 = vadd.f32 %v1213, %v1272
  %v1276 = vmul.f32 %v1274, 0.5
  %v1277 = vmul.f32 %v1275, 0.5
  %v1278 = vtanh.pop %v1276
  %v1279 = vtanh.pop %v1277
  %v1280 = vmul.f32 %v1278, 0.5
  %v1281 = vmul.f32 %v1279, 0.5
  %v1282 = vadd.f32 %v1280, 0.5
  %v1283 = vadd.f32 %v1281, 0.5
  %v1284 = vtanh.pop %v1275
  %s1285 = scalar_lea.vmem %s7, 48
  %v1286 = vld [vmem:[%s1285] sm:$0xff]
  %v1287 = vld [vmem:[#allocation4] sm:$0xff]
  %1289 = vrot.lane.b32.xlu0 %v1287, 64
  %v1290 = vpop.permute.xlu0 %1289
  %v1292 = vmul.f32 %v1282, %v1290
  %1294 = vrot.lane.b32.xlu0 %v1284, 64
  %v1295 = vpop.permute.xlu0 %1294
  %v1297 = vmul.f32 %v1282, %v1295
  %1299 = vrot.lane.b32.xlu0 %v1297, 64
  %v1300 = vpop.permute.xlu0 %1299
  %v1302 = vadd.f32 %v1292, %v1300
  %v1303 = vtanh.pop %v1302
  %1305 = vrot.lane.b32.xlu0 %v1303, 64
  %v1306 = vpop.permute.xlu0 %1305
  %v1308 = vmul.f32 %v1283, %v1306
  %v1309 = vmul.f32 %v1308, %v1286
  %1311 = vrot.lane.b32.xlu0 %v1286, 64
  %v1312 = vpop.permute.xlu0 %1311
  %v1314 = vmul.f32 %v1302, %v1312
  %1316 = vrot.lane.b32.xlu0 %v1314, 64
  %v1317 = vpop.permute.xlu0 %1316
  %1319 = vst.msk [vmem:[#allocation4] sm:$0xff] %vm467, %v1317
  %1320 = vst.msk [vmem:[#allocation3] sm:$0xff] %vm467, %v1309
  %v1321 = vld [vmem:[#allocation5] sm:$0xff]
  %v1322 = vsub.f32 %v1286, 1.0
  %v1323 = vmul.f32 %v1322, 1000000.0
  %v1324 = vadd.f32 %v1309, %v1323
  %v1325 = vmax.f32 %v1321, %v1324
  %1326 = vst.msk [vmem:[#allocation5] sm:$0xff] %vm467, %v1325
  %v1327 = vld [vmem:[%s478] sm:$0xff]
  %v1328 = vld [vmem:[%s478 + $0x8] sm:$0xff]
  %v1329 = vld [vmem:[%s473] sm:$0xff]
  %v1330 = vld [vmem:[%s473 + $0x8] sm:$0xff]
  %v1331 = vsel %vm465, %v1329, %v1327
  %v1332 = vsel %vm466, %v1330, %v1328
  %v1333 = vld [vmem:[#allocation3] sm:$0xff]
  %v1334 = vld [vmem:[%s8] sm:$0xff]
  %v1335 = vld [vmem:[%s8 + $0x8] sm:$0xff]
  %v1336 = vld [vmem:[%s8 + $0x10] sm:$0xff]
  %v1337 = vld [vmem:[%s8 + $0x18] sm:$0xff]
  %v1338 = vld [vmem:[%s8 + $0x20] sm:$0xff]
  %v1339 = vld [vmem:[%s8 + $0x28] sm:$0xff]
  %v1340 = vld [vmem:[%s8 + $0x30] sm:$0xff]
  %v1341 = vld [vmem:[%s8 + $0x38] sm:$0xff]
  %v1342 = vld [vmem:[%s8 + $0x40] sm:$0xff]
  %v1343 = vld [vmem:[%s8 + $0x48] sm:$0xff]
  %v1344 = vld [vmem:[%s8 + $0x50] sm:$0xff]
  %v1345 = vld [vmem:[%s8 + $0x58] sm:$0xff]
  %v1346 = vld [vmem:[%s8 + $0x60] sm:$0xff]
  %v1347 = vld [vmem:[%s8 + $0x68] sm:$0xff]
  %v1348 = vld [vmem:[%s8 + $0x70] sm:$0xff]
  %v1349 = vld [vmem:[%s8 + $0x78] sm:$0xff]
  %v1351 = vsel %vm467, %v1333, 0
  %1353 = vmatpush.msra.mxu0 0.0
  %1354 = vmatpush.msra.mxu0 0.0
  %1355 = vmatpush.msra.mxu0 0.0
  %1356 = vmatpush.msra.mxu0 0.0
  %1357 = vmatpush.msra.mxu0 0.0
  %1358 = vmatpush.msra.mxu0 0.0
  %1359 = vmatpush.msra.mxu0 0.0
  %1360 = vmatpush.msra.mxu0 0.0
  %1361 = vmatpush.msra.mxu0 %v1348
  %1362 = vmatpush.msra.mxu0 %v1346
  %1363 = vmatpush.msra.mxu0 %v1344
  %1364 = vmatpush.msra.mxu0 %v1342
  %1365 = vmatpush.msra.mxu0 %v1340
  %1366 = vmatpush.msra.mxu0 %v1338
  %1367 = vmatpush.msra.mxu0 %v1336
  %1368 = vmatpush.msra.mxu0 %v1334
  %1369 = vmatmul.f32.gmra.mxu0 %v1351
  %v1370 = vpop.f32.mrf.mxu0
  %v1371 = vadd.f32 0.0, %v1370
  %1372 = vdwg.mxu0
  %1373 = vmatpush.msra.mxu0 0.0
  %1374 = vmatpush.msra.mxu0 0.0
  %1375 = vmatpush.msra.mxu0 0.0
  %1376 = vmatpush.msra.mxu0 0.0
  %1377 = vmatpush.msra.mxu0 0.0
  %1378 = vmatpush.msra.mxu0 0.0
  %1379 = vmatpush.msra.mxu0 0.0
  %1380 = vmatpush.msra.mxu0 0.0
  %1381 = vmatpush.msra.mxu0 %v1349
  %1382 = vmatpush.msra.mxu0 %v1347
  %1383 = vmatpush.msra.mxu0 %v1345
  %1384 = vmatpush.msra.mxu0 %v1343
  %1385 = vmatpush.msra.mxu0 %v1341
  %1386 = vmatpush.msra.mxu0 %v1339
  %1387 = vmatpush.msra.mxu0 %v1337
  %1388 = vmatpush.msra.mxu0 %v1335
  %1389 = vmatmul.f32.gmra.mxu0 %v1351
  %v1390 = vpop.f32.mrf.mxu0
  %v1391 = vadd.f32 0.0, %v1390
  %1392 = vdwg.mxu0
  %v1393 = vadd.f32 %v1331, %v1371
  %v1394 = vadd.f32 %v1332, %v1391
  %v1395 = vmul.f32 %v1393, 0.5
  %v1396 = vmul.f32 %v1394, 0.5
  %v1397 = vtanh.pop %v1395
  %v1398 = vtanh.pop %v1396
  %v1399 = vmul.f32 %v1397, 0.5
  %v1400 = vmul.f32 %v1398, 0.5
  %v1401 = vadd.f32 %v1399, 0.5
  %v1402 = vadd.f32 %v1400, 0.5
  %v1403 = vtanh.pop %v1394
  %s1404 = scalar_lea.vmem %s7, 56
  %v1405 = vld [vmem:[%s1404] sm:$0xff]
  %v1406 = vld [vmem:[#allocation4] sm:$0xff]
  %1408 = vrot.lane.b32.xlu0 %v1406, 64
  %v1409 = vpop.permute.xlu0 %1408
  %v1411 = vmul.f32 %v1401, %v1409
  %1413 = vrot.lane.b32.xlu0 %v1403, 64
  %v1414 = vpop.permute.xlu0 %1413
  %v1416 = vmul.f32 %v1401, %v1414
  %1418 = vrot.lane.b32.xlu0 %v1416, 64
  %v1419 = vpop.permute.xlu0 %1418
  %v1421 = vadd.f32 %v1411, %v1419
  %v1422 = vtanh.pop %v1421
  %1424 = vrot.lane.b32.xlu0 %v1422, 64
  %v1425 = vpop.permute.xlu0 %1424
  %v1427 = vmul.f32 %v1402, %v1425
  %v1428 = vmul.f32 %v1427, %v1405
  %1430 = vrot.lane.b32.xlu0 %v1405, 64
  %v1431 = vpop.permute.xlu0 %1430
  %v1433 = vmul.f32 %v1421, %v1431
  %1435 = vrot.lane.b32.xlu0 %v1433, 64
  %v1436 = vpop.permute.xlu0 %1435
  %1438 = vst.msk [vmem:[#allocation4] sm:$0xff] %vm467, %v1436
  %1439 = vst.msk [vmem:[#allocation3] sm:$0xff] %vm467, %v1428
  %v1440 = vld [vmem:[#allocation5] sm:$0xff]
  %v1441 = vsub.f32 %v1405, 1.0
  %v1442 = vmul.f32 %v1441, 1000000.0
  %v1443 = vadd.f32 %v1428, %v1442
  %v1444 = vmax.f32 %v1440, %v1443
  %1445 = vst.msk [vmem:[#allocation5] sm:$0xff] %vm467, %v1444
  %v1446 = vld [vmem:[#allocation5] sm:$0xff]
  %v1447 = vld [vmem:[%s9] sm:$0xff]
  %v1448 = vld [vmem:[%s9 + $0x8] sm:$0xff]
  %v1449 = vld [vmem:[%s9 + $0x10] sm:$0xff]
  %v1450 = vld [vmem:[%s9 + $0x18] sm:$0xff]
  %v1451 = vld [vmem:[%s9 + $0x20] sm:$0xff]
  %v1452 = vld [vmem:[%s9 + $0x28] sm:$0xff]
  %v1453 = vld [vmem:[%s9 + $0x30] sm:$0xff]
  %v1454 = vld [vmem:[%s9 + $0x38] sm:$0xff]
  %v1456 = vsel %vm467, %v1446, 0
  %1458 = vmatpush.msra.mxu0 0.0
  %1459 = vmatpush.msra.mxu0 0.0
  %1460 = vmatpush.msra.mxu0 0.0
  %1461 = vmatpush.msra.mxu0 0.0
  %1462 = vmatpush.msra.mxu0 0.0
  %1463 = vmatpush.msra.mxu0 0.0
  %1464 = vmatpush.msra.mxu0 0.0
  %1465 = vmatpush.msra.mxu0 0.0
  %1466 = vmatpush.msra.mxu0 %v1454
  %1467 = vmatpush.msra.mxu0 %v1453
  %1468 = vmatpush.msra.mxu0 %v1452
  %1469 = vmatpush.msra.mxu0 %v1451
  %1470 = vmatpush.msra.mxu0 %v1450
  %1471 = vmatpush.msra.mxu0 %v1449
  %1472 = vmatpush.msra.mxu0 %v1448
  %1473 = vmatpush.msra.mxu0 %v1447
  %1474 = vmatmul.f32.gmra.mxu0 %v1456
  %v1475 = vpop.f32.mrf.mxu0
  %v1476 = vadd.f32 0.0, %v1475
  %1477 = vdwg.mxu0
  %vm1478 = vcmask 39936
  %1479 = vst.msk [vmem:[%s10] sm:$0xff] %vm1478, %v1476
  // Predicated region
  $region42: #{bilstm_model_forward.1} parent=0 // pred_check
    _
  $region43: #{bilstm_model_forward.1} parent=0 // pred_check_branch
    %1481 = sbr.rel (0) target = $region45
  $region44: #{bilstm_model_forward.1} parent=0 // pred_region
    _
  $region45: #{bilstm_model_forward.1} parent=0 // pred_fallthru
    _
  // Predicated region
  $region46: #{bilstm_model_forward.1} parent=0 // pred_check
    _
  $region47: #{bilstm_model_forward.1} parent=0 // pred_check_branch
    %1483 = sbr.rel (0) target = $region49
  $region48: #{bilstm_model_forward.1} parent=0 // pred_region
    _
  $region49: #{bilstm_model_forward.1} parent=0 // pred_fallthru
    _

</llo_original>
